<compile_context>
chip_gen: v5e
topology: v5e:2x2
jax: 0.10.0
libtpu: 0.0.40
codegen_flags: <defaults>
</compile_context>

<pallas_src>
import functools

import jax
import jax.numpy as jnp
import numpy as np
from jax.experimental import pallas as pl
from jax.experimental.pallas import tpu as pltpu

FC_INPUT = 784      # args.fc_input  (MNIST 28*28, implied by LeNet-300-100)
NUM_CLASSES = 10    # args.num_classes


def _round_up(n, m):
    return ((n + m - 1) // m) * m


def _is_megacore():
    """True on chips with 2 TensorCores (v7x); safe default False."""
    try:
        kind = jax.devices()[0].device_kind.lower()
        return "v7" in kind
    except Exception:  # pragma: no cover
        return False


# ----------------------------------------------------------------------------
# Fused MLP kernel:
#   (bt, Dp)x(Dp, H1p) -> +b -> ReLU -> x(H1p, H2p) -> +b -> ReLU -> x(H2p, Cp) -> +b
# All feature dims are multiples of 128 (lane-dense), matmul inputs are bf16,
# accumulation and elementwise work are f32.  Weights/biases are resident
# (single-buffered); only the x / out batch tiles stream.
# ----------------------------------------------------------------------------
def mlp_kernel(x_ref, w1_ref, b1_ref, w2_ref, b2_ref, w3_ref, b3_ref, o_ref):
    cdt = w1_ref.dtype  # compute dtype for MXU inputs (bf16)
    h = jnp.dot(x_ref[...], w1_ref[...], preferred_element_type=jnp.float32)
    h = jnp.maximum(h + b1_ref[...], 0.0)
    h = jnp.dot(h.astype(cdt), w2_ref[...], preferred_element_type=jnp.float32)
    h = jnp.maximum(h + b2_ref[...], 0.0)
    o = jnp.dot(h.astype(cdt), w3_ref[...], preferred_element_type=jnp.float32)
    o_ref[...] = o + b3_ref[...]


# ----------------------------------------------------------------------------
# One-time parameter preparation (transpose, zero-pad to 128-multiples, cast).
# Torch convention weights (out, in) -> padded (in_p, out_p) matmul layout.
# ----------------------------------------------------------------------------
def prepare_params(params, compute_dtype=jnp.bfloat16):
    w1, b1, w2, b2, w3, b3 = params
    H1, D = w1.shape
    H2 = w2.shape[0]
    C = w3.shape[0]
    Dp, H1p, H2p, Cp = (_round_up(d, 128) for d in (D, H1, H2, C))

    def padw(w, rp, cp):
        r, c = w.shape
        return jnp.pad(w.astype(jnp.float32), ((0, rp - r), (0, cp - c))).astype(compute_dtype)

    def padb(b, cp):
        return jnp.pad(b.astype(jnp.float32), (0, cp - b.shape[0])).reshape(1, cp)

    padded = (
        padw(w1.T, Dp, H1p), padb(b1, H1p),
        padw(w2.T, H1p, H2p), padb(b2, H2p),
        padw(w3.T, H2p, Cp), padb(b3, Cp),
    )
    return padded, (D, C)


def _choose_bt(B, max_bt=256):
    """Batch tile: multiple of 8, one step for small B, 2 even steps on v7x."""
    Bp8 = _round_up(B, 8)
    if Bp8 <= max_bt:
        if _is_megacore() and Bp8 >= 16:
            return _round_up(Bp8 // 2, 8)   # 2 grid steps -> both TensorCores
        return Bp8                           # single grid step
    return max_bt


def _vmem_limit_bytes(bt, Dp, H1p, H2p, Cp, compute_itemsize):
    weights = (Dp * H1p + H1p * H2p + H2p * Cp) * compute_itemsize
    biases = (H1p + H2p + Cp) * 4
    stream = 2 * (bt * Dp * compute_itemsize + bt * Cp * 4)   # double-buffered x/out
    acts = 2 * bt * (H1p + H2p) * 4                            # in-kernel intermediates
    need = weights + biases + stream + acts
    return int(min(max(2 * need + (4 << 20), 8 << 20), 32 << 20))


@functools.partial(jax.jit, static_argnames=("bt", "bp", "c"))
def _fc1_padded_forward(x, w1p, b1p, w2p, b2p, w3p, b3p, *, bt, bp, c):
    B, D = x.shape
    Dp, H1p = w1p.shape
    H2p = w2p.shape[1]
    Cp = w3p.shape[1]
    cdt = w1p.dtype

    # Pad the streaming batch only (weights are already padded/cast once).
    xp = jnp.pad(x.astype(jnp.float32), ((0, bp - B), (0, Dp - D))).astype(cdt)

    resident = lambda shape: pl.BlockSpec(
        shape, lambda i: (0,) * len(shape), pipeline_mode=pl.Buffered(1))

    out_p = pl.pallas_call(
        mlp_kernel,
        out_shape=jax.ShapeDtypeStruct((bp, Cp), jnp.float32),
        grid=(bp // bt,),
        in_specs=[
            pl.BlockSpec((bt, Dp), lambda i: (i, 0)),   # streaming x tile
            resident((Dp, H1p)), resident((1, H1p)),
            resident((H1p, H2p)), resident((1, H2p)),
            resident((H2p, Cp)), resident((1, Cp)),
        ],
        out_specs=pl.BlockSpec((bt, Cp), lambda i: (i, 0)),
        compiler_params=pltpu.CompilerParams(
            dimension_semantics=("parallel",),
            vmem_limit_bytes=_vmem_limit_bytes(bt, Dp, H1p, H2p, Cp, cdt.itemsize),
        ),
    )(xp, w1p, b1p, w2p, b2p, w3p, b3p)

    # TODO(synk): if the consumer can take the padded (bp, Cp) slab, return it
    # directly and slice downstream to avoid the extra HBM pass here.
    return out_p[:B, :c]


def fc1_forward(x, prepared, *, bt=None):
    """x: (B, fc_input); prepared: output of prepare_params(params)."""
    padded, (_, C) = prepared
    B = x.shape[0]
    if bt is None:
        bt = _choose_bt(B)
    bt = min(_round_up(bt, 8), 256)
    bp = _round_up(max(B, bt), bt)
    return _fc1_padded_forward(x, *padded, bt=bt, bp=bp, c=C)


# ----------------------------------------------------------------------------
# Pure-JAX reference (mirrors the PyTorch forward exactly, f32)
# ----------------------------------------------------------------------------
def reference_forward(x, params):
    w1, b1, w2, b2, w3, b3 = params
    h = jax.nn.relu(x @ w1.T + b1)
    h = jax.nn.relu(h @ w2.T + b2)
    return h @ w3.T + b3


def init_params(key, fc_input=FC_INPUT, num_classes=NUM_CLASSES):
    ks = jax.random.split(key, 6)

    def n(k, shape, scale=0.05):
        return (scale * jax.random.normal(k, shape)).astype(jnp.float32)

    return (
        n(ks[0], (300, fc_input), 0.02), n(ks[1], (300,)),         # fc1 (torch out,in)
        n(ks[2], (100, 300)),            n(ks[3], (100,)),         # fc2
        n(ks[4], (num_classes, 100)),    n(ks[5], (num_classes,))  # fc3
    )


if __name__ == "__main__":
    key = jax.random.PRNGKey(0)
    kx, kp = jax.random.split(key)

    params = init_params(kp)
    prepared = prepare_params(params)          # one-time pad/transpose/cast

    # Main check: small batch.
    B = 16
    x = jax.random.normal(kx, (B, FC_INPUT), dtype=jnp.float32)
    out = jax.block_until_ready(fc1_forward(x, prepared))
    assert out.shape == (B, NUM_CLASSES)
    ref = jax.block_until_ready(reference_forward(x, params))
    # bf16 MXU inputs with f32 accumulation -> a few 1e-3 absolute deviation.
    np.testing.assert_allclose(np.asarray(out), np.asarray(ref),
                               rtol=2e-2, atol=2e-2)

    # Ragged-batch check (exercises batch padding path).
    x5 = x[:5]
    out5 = jax.block_until_ready(fc1_forward(x5, prepared))
    np.testing.assert_allclose(np.asarray(out5), np.asarray(ref)[:5],
                               rtol=2e-2, atol=2e-2)

    print("KERNEL_OK")
</pallas_src>

<mosaic_0001>
module attributes {stable_mosaic.version = 11 : i64} {
  func.func @mlp_kernel(%arg0: i32, %arg1: memref<16x896xbf16, #tpu.memory_space<vmem>>, %arg2: memref<896x384xbf16, #tpu.memory_space<vmem>>, %arg3: memref<1x384xf32, #tpu.memory_space<vmem>>, %arg4: memref<384x128xbf16, #tpu.memory_space<vmem>>, %arg5: memref<1x128xf32, #tpu.memory_space<vmem>>, %arg6: memref<128x128xbf16, #tpu.memory_space<vmem>>, %arg7: memref<1x128xf32, #tpu.memory_space<vmem>>, %arg8: memref<16x128xf32, #tpu.memory_space<vmem>>) attributes {dimension_semantics = [#tpu.dimension_semantics<parallel>], iteration_bounds = array<i64: 1>, scalar_prefetch = 0 : i64, scratch_operands = 0 : i64, tpu.core_type = #tpu.core_type<tc>, window_params = [{transform_indices = @transform_0, window_bounds = array<i64: 16, 896>}, {pipeline_mode = #tpu.pipeline_mode<synchronous>, transform_indices = @transform_1, window_bounds = array<i64: 896, 384>}, {pipeline_mode = #tpu.pipeline_mode<synchronous>, transform_indices = @transform_2, window_bounds = array<i64: 1, 384>}, {pipeline_mode = #tpu.pipeline_mode<synchronous>, transform_indices = @transform_3, window_bounds = array<i64: 384, 128>}, {pipeline_mode = #tpu.pipeline_mode<synchronous>, transform_indices = @transform_4, window_bounds = array<i64: 1, 128>}, {pipeline_mode = #tpu.pipeline_mode<synchronous>, transform_indices = @transform_5, window_bounds = array<i64: 128, 128>}, {pipeline_mode = #tpu.pipeline_mode<synchronous>, transform_indices = @transform_6, window_bounds = array<i64: 1, 128>}, {transform_indices = @transform_7, window_bounds = array<i64: 16, 128>}]} {
    %c0 = arith.constant 0 : index
    %c0_0 = arith.constant 0 : index
    %0 = vector.load %arg1[%c0, %c0_0] : memref<16x896xbf16, #tpu.memory_space<vmem>>, vector<16x896xbf16>
    %c0_1 = arith.constant 0 : index
    %c0_2 = arith.constant 0 : index
    %1 = vector.load %arg2[%c0_1, %c0_2] : memref<896x384xbf16, #tpu.memory_space<vmem>>, vector<896x384xbf16>
    %cst = arith.constant dense<0.000000e+00> : vector<16x384xf32>
    %2 = tpu.matmul %0, %1, %cst {dimension_numbers = #tpu.dot_dimension_numbers<[1], [0], [0], [1], [0, 0, 1, 1], [], []>} : vector<16x896xbf16>, vector<896x384xbf16>, vector<16x384xf32> -> vector<16x384xf32>
    %c0_3 = arith.constant 0 : index
    %c0_4 = arith.constant 0 : index
    %3 = vector.load %arg3[%c0_3, %c0_4] : memref<1x384xf32, #tpu.memory_space<vmem>>, vector<1x384xf32>
    %4 = vector.broadcast %3 : vector<1x384xf32> to vector<16x384xf32>
    %5 = arith.addf %2, %4 : vector<16x384xf32>
    %cst_5 = arith.constant 0.000000e+00 : f32
    %6 = vector.broadcast %cst_5 : f32 to vector<16x384xf32>
    %7 = arith.maximumf %5, %6 : vector<16x384xf32>
    %8 = arith.truncf %7 : vector<16x384xf32> to vector<16x384xbf16>
    %c0_6 = arith.constant 0 : index
    %c0_7 = arith.constant 0 : index
    %9 = vector.load %arg4[%c0_6, %c0_7] : memref<384x128xbf16, #tpu.memory_space<vmem>>, vector<384x128xbf16>
    %cst_8 = arith.constant dense<0.000000e+00> : vector<16x128xf32>
    %10 = tpu.matmul %8, %9, %cst_8 {dimension_numbers = #tpu.dot_dimension_numbers<[1], [0], [0], [1], [0, 0, 1, 1], [], []>} : vector<16x384xbf16>, vector<384x128xbf16>, vector<16x128xf32> -> vector<16x128xf32>
    %c0_9 = arith.constant 0 : index
    %c0_10 = arith.constant 0 : index
    %11 = vector.load %arg5[%c0_9, %c0_10] : memref<1x128xf32, #tpu.memory_space<vmem>>, vector<1x128xf32>
    %12 = vector.broadcast %11 : vector<1x128xf32> to vector<16x128xf32>
    %13 = arith.addf %10, %12 : vector<16x128xf32>
    %cst_11 = arith.constant 0.000000e+00 : f32
    %14 = vector.broadcast %cst_11 : f32 to vector<16x128xf32>
    %15 = arith.maximumf %13, %14 : vector<16x128xf32>
    %16 = arith.truncf %15 : vector<16x128xf32> to vector<16x128xbf16>
    %c0_12 = arith.constant 0 : index
    %c0_13 = arith.constant 0 : index
    %17 = vector.load %arg6[%c0_12, %c0_13] : memref<128x128xbf16, #tpu.memory_space<vmem>>, vector<128x128xbf16>
    %cst_14 = arith.constant dense<0.000000e+00> : vector<16x128xf32>
    %18 = tpu.matmul %16, %17, %cst_14 {dimension_numbers = #tpu.dot_dimension_numbers<[1], [0], [0], [1], [0, 0, 1, 1], [], []>} : vector<16x128xbf16>, vector<128x128xbf16>, vector<16x128xf32> -> vector<16x128xf32>
    %c0_15 = arith.constant 0 : index
    %c0_16 = arith.constant 0 : index
    %19 = vector.load %arg7[%c0_15, %c0_16] : memref<1x128xf32, #tpu.memory_space<vmem>>, vector<1x128xf32>
    %20 = vector.broadcast %19 : vector<1x128xf32> to vector<16x128xf32>
    %21 = arith.addf %18, %20 : vector<16x128xf32>
    %c0_17 = arith.constant 0 : index
    %c0_18 = arith.constant 0 : index
    %22 = vector.load %arg8[%c0_17, %c0_18] : memref<16x128xf32, #tpu.memory_space<vmem>>, vector<16x128xf32>
    tpu.vector_store %arg8[%c0_17, %c0_18], %21 {strides = array<i32>} : memref<16x128xf32, #tpu.memory_space<vmem>>, vector<16x128xf32>,
    return
  }
  func.func @transform_0(%arg0: i32) -> (i32, i32) {
    %c0_i32 = arith.constant 0 : i32
    %c0_i32_0 = arith.constant 0 : i32
    return %arg0, %c0_i32 : i32, i32
  }
  func.func @transform_1(%arg0: i32) -> (i32, i32) {
    %c0_i32 = arith.constant 0 : i32
    %c0_i32_0 = arith.constant 0 : i32
    %c0_i32_1 = arith.constant 0 : i32
    return %c0_i32, %c0_i32_0 : i32, i32
  }
  func.func @transform_2(%arg0: i32) -> (i32, i32) {
    %c0_i32 = arith.constant 0 : i32
    %c0_i32_0 = arith.constant 0 : i32
    %c0_i32_1 = arith.constant 0 : i32
    return %c0_i32, %c0_i32_0 : i32, i32
  }
  func.func @transform_3(%arg0: i32) -> (i32, i32) {
    %c0_i32 = arith.constant 0 : i32
    %c0_i32_0 = arith.constant 0 : i32
    %c0_i32_1 = arith.constant 0 : i32
    return %c0_i32, %c0_i32_0 : i32, i32
  }
  func.func @transform_4(%arg0: i32) -> (i32, i32) {
    %c0_i32 = arith.constant 0 : i32
    %c0_i32_0 = arith.constant 0 : i32
    %c0_i32_1 = arith.constant 0 : i32
    return %c0_i32, %c0_i32_0 : i32, i32
  }
  func.func @transform_5(%arg0: i32) -> (i32, i32) {
    %c0_i32 = arith.constant 0 : i32
    %c0_i32_0 = arith.constant 0 : i32
    %c0_i32_1 = arith.constant 0 : i32
    return %c0_i32, %c0_i32_0 : i32, i32
  }
  func.func @transform_6(%arg0: i32) -> (i32, i32) {
    %c0_i32 = arith.constant 0 : i32
    %c0_i32_0 = arith.constant 0 : i32
    %c0_i32_1 = arith.constant 0 : i32
    return %c0_i32, %c0_i32_0 : i32, i32
  }
  func.func @transform_7(%arg0: i32) -> (i32, i32) {
    %c0_i32 = arith.constant 0 : i32
    %c0_i32_0 = arith.constant 0 : i32
    return %arg0, %c0_i32 : i32, i32
  }
}

</mosaic_0001>

<llo_original>
// kernel: _fc1_padded_forward.1
$region0: #{_fc1_padded_forward.1}
  #allocation0 [shape = 'u32[]', space=smem, size = 0x4, offset = 0x4, fixed_abs, tag = 'smem constant byte address 0x4 - core index']
  #allocation1 [shape = 'u32[72,128]{1,0:T(1,128)}', space=vmem, size = 0x9000, scoped, tag = 'internal scratch']
  %s0 = inlined_call_operand.vmem [shape: bf16[16,896], index: 0, kind: input, shape index: {}]
  %s1 = inlined_call_operand.hbm [shape: bf16[896,384], index: 1, kind: input, shape index: {}]
  %s2 = inlined_call_operand.vmem [shape: f32[1,384], index: 2, kind: input, shape index: {}]
  %s3 = inlined_call_operand.vmem [shape: bf16[384,128], index: 3, kind: input, shape index: {}]
  %s4 = inlined_call_operand.vmem [shape: f32[1,128], index: 4, kind: input, shape index: {}]
  %s5 = inlined_call_operand.vmem [shape: bf16[128,128], index: 5, kind: input, shape index: {}]
  %s6 = inlined_call_operand.vmem [shape: f32[1,128], index: 6, kind: input, shape index: {}]
  %s7 = inlined_call_operand.hbm [shape: f32[16,128], index: 7, kind: output, shape index: {}]
  %s8 = sld [smem:[#allocation0]]
  $region42: #{_fc1_padded_forward.1} parent=0
    _
  %s10 = ssub.s32 1, %s8
  %s11 = scalar_select 0, %s10, %s8
  $region1: #{_fc1_padded_forward.1} parent=0
    #allocation2 [shape = 'u8[688128]{0}', space=vmem, size = 0xa8000, scoped, tag = 'input window, operand 1, single buffered']
    #allocation3 [shape = 's32[1]{0}', space=sflag, size = 0x4, scoped, tag = 'scoped memory for _fc1_padded_forward.1']
    #allocation4 [shape = 's32[1]{0}', space=sflag, size = 0x4, scoped, tag = 'scoped memory for _fc1_padded_forward.1']
    #allocation5 [shape = 'u8[8192]{0}', space=vmem, size = 0x2000, scoped, tag = 'output window, operand 0, single buffered']
    %12 = vsyncpa [#allocation3], 0
    %13 = vsyncpa [#allocation4], 0
    // Predicated region
    $region2: #{_fc1_padded_forward.1} parent=1 // pred_check
      _
    $region3: #{_fc1_padded_forward.1} parent=1 // pred_check_branch
      %15 = sbr.rel (0) target = $region5
    $region4: #{_fc1_padded_forward.1} parent=1 // pred_region
      _
    $region5: #{_fc1_padded_forward.1} parent=1 // pred_fallthru
      _
    // Predicated region
    $region6: #{_fc1_padded_forward.1} parent=1 // pred_check
      _
    $region7: #{_fc1_padded_forward.1} parent=1 // pred_check_branch
      %17 = sbr.rel (0) target = $region9
    $region8: #{_fc1_padded_forward.1} parent=1 // pred_region
      %19 = vsyncadd [#allocation3], 0
      %s20 = sshll.u32 %s1, 4
      %s21 = int_to_ptr.hbm [resolvable:$true] %s20
      %s22 = sshll.u32 [#allocation2], 4
      %s23 = int_to_ptr.vmem [resolvable:$true] %s22
      %28 = dma.hbm_to_vmem [thread:$0]  %s21, 21504, %s23, [#allocation3], 192, 192, 12
    $region9: #{_fc1_padded_forward.1} parent=1 // pred_fallthru
      _
    // Predicated region
    $region10: #{_fc1_padded_forward.1} parent=1 // pred_check
      _
    $region11: #{_fc1_padded_forward.1} parent=1 // pred_check_branch
      %30 = sbr.rel (0) target = $region13
    $region12: #{_fc1_padded_forward.1} parent=1 // pred_region
      _
    $region13: #{_fc1_padded_forward.1} parent=1 // pred_fallthru
      _
    // Predicated region
    $region14: #{_fc1_padded_forward.1} parent=1 // pred_check
      _
    $region15: #{_fc1_padded_forward.1} parent=1 // pred_check_branch
      %32 = sbr.rel (0) target = $region17
    $region16: #{_fc1_padded_forward.1} parent=1 // pred_region
      _
    $region17: #{_fc1_padded_forward.1} parent=1 // pred_fallthru
      _
    // Predicated region
    $region18: #{_fc1_padded_forward.1} parent=1 // pred_check
      _
    $region19: #{_fc1_padded_forward.1} parent=1 // pred_check_branch
      %34 = sbr.rel (0) target = $region21
    $region20: #{_fc1_padded_forward.1} parent=1 // pred_region
      _
    $region21: #{_fc1_padded_forward.1} parent=1 // pred_fallthru
      _
    // Predicated region
    $region22: #{_fc1_padded_forward.1} parent=1 // pred_check
      _
    $region23: #{_fc1_padded_forward.1} parent=1 // pred_check_branch
      %36 = sbr.rel (0) target = $region25
    $region24: #{_fc1_padded_forward.1} parent=1 // pred_region
      _
    $region25: #{_fc1_padded_forward.1} parent=1 // pred_fallthru
      _
    // Predicated region
    $region26: #{_fc1_padded_forward.1} parent=1 // pred_check
      _
    $region27: #{_fc1_padded_forward.1} parent=1 // pred_check_branch
      %38 = sbr.rel (0) target = $region29
    $region28: #{_fc1_padded_forward.1} parent=1 // pred_region
      _
    $region29: #{_fc1_padded_forward.1} parent=1 // pred_fallthru
      _
    // Predicated region
    $region30: #{_fc1_padded_forward.1} parent=1 // pred_check
      _
    $region31: #{_fc1_padded_forward.1} parent=1 // pred_check_branch
      %40 = sbr.rel (0) target = $region33
    $region32: #{_fc1_padded_forward.1} parent=1 // pred_region
      %42 = dma.done [#allocation3], 21504
    $region33: #{_fc1_padded_forward.1} parent=1 // pred_fallthru
      _
    %v43 = vld [vmem:[%s0] sm:$0xff]
    %v44 = vld [vmem:[%s0 + $0x8] sm:$0xff]
    %v45 = vld [vmem:[%s0 + $0x10] sm:$0xff]
    %v46 = vld [vmem:[%s0 + $0x18] sm:$0xf]
    %v47 = vld [vmem:[%s0 + $0x1c] sm:$0xff]
    %v48 = vld [vmem:[%s0 + $0x24] sm:$0xff]
    %v49 = vld [vmem:[%s0 + $0x2c] sm:$0xff]
    %v50 = vld [vmem:[%s0 + $0x34] sm:$0xf]
    %v51 = vld [vmem:[#allocation2] sm:$0xff]
    %v52 = vld [vmem:[#allocation2 + $0x8] sm:$0xf]
    %v53 = vld [vmem:[#allocation2 + $0xc] sm:$0xff]
    %v54 = vld [vmem:[#allocation2 + $0x14] sm:$0xf]
    %v55 = vld [vmem:[#allocation2 + $0x18] sm:$0xff]
    %v56 = vld [vmem:[#allocation2 + $0x20] sm:$0xf]
    %v57 = vld [vmem:[#allocation2 + $0x24] sm:$0xff]
    %v58 = vld [vmem:[#allocation2 + $0x2c] sm:$0xf]
    %v59 = vld [vmem:[#allocation2 + $0x30] sm:$0xff]
    %v60 = vld [vmem:[#allocation2 + $0x38] sm:$0xf]
    %v61 = vld [vmem:[#allocation2 + $0x3c] sm:$0xff]
    %v62 = vld [vmem:[#allocation2 + $0x44] sm:$0xf]
    %v63 = vld [vmem:[#allocation2 + $0x48] sm:$0xff]
    %v64 = vld [vmem:[#allocation2 + $0x50] sm:$0xf]
    %v65 = vld [vmem:[#allocation2 + $0x54] sm:$0xff]
    %v66 = vld [vmem:[#allocation2 + $0x5c] sm:$0xf]
    %v67 = vld [vmem:[#allocation2 + $0x60] sm:$0xff]
    %v68 = vld [vmem:[#allocation2 + $0x68] sm:$0xf]
    %v69 = vld [vmem:[#allocation2 + $0x6c] sm:$0xff]
    %v70 = vld [vmem:[#allocation2 + $0x74] sm:$0xf]
    %v71 = vld [vmem:[#allocation2 + $0x78] sm:$0xff]
    %v72 = vld [vmem:[#allocation2 + $0x80] sm:$0xf]
    %v73 = vld [vmem:[#allocation2 + $0x84] sm:$0xff]
    %v74 = vld [vmem:[#allocation2 + $0x8c] sm:$0xf]
    %v75 = vld [vmem:[#allocation2 + $0x90] sm:$0xff]
    %v76 = vld [vmem:[#allocation2 + $0x98] sm:$0xf]
    %v77 = vld [vmem:[#allocation2 + $0x9c] sm:$0xff]
    %v78 = vld [vmem:[#allocation2 + $0xa4] sm:$0xf]
    %v79 = vld [vmem:[#allocation2 + $0xa8] sm:$0xff]
    %v80 = vld [vmem:[#allocation2 + $0xb0] sm:$0xf]
    %v81 = vld [vmem:[#allocation2 + $0xb4] sm:$0xff]
    %v82 = vld [vmem:[#allocation2 + $0xbc] sm:$0xf]
    %v83 = vld [vmem:[#allocation2 + $0xc0] sm:$0xff]
    %v84 = vld [vmem:[#allocation2 + $0xc8] sm:$0xf]
    %v85 = vld [vmem:[#allocation2 + $0xcc] sm:$0xff]
    %v86 = vld [vmem:[#allocation2 + $0xd4] sm:$0xf]
    %v87 = vld [vmem:[#allocation2 + $0xd8] sm:$0xff]
    %v88 = vld [vmem:[#allocation2 + $0xe0] sm:$0xf]
    %v89 = vld [vmem:[#allocation2 + $0xe4] sm:$0xff]
    %v90 = vld [vmem:[#allocation2 + $0xec] sm:$0xf]
    %v91 = vld [vmem:[#allocation2 + $0xf0] sm:$0xff]
    %v92 = vld [vmem:[#allocation2 + $0xf8] sm:$0xf]
    %v93 = vld [vmem:[#allocation2 + $0xfc] sm:$0xff]
    %v94 = vld [vmem:[#allocation2 + $0x104] sm:$0xf]
    %v95 = vld [vmem:[#allocation2 + $0x108] sm:$0xff]
    %v96 = vld [vmem:[#allocation2 + $0x110] sm:$0xf]
    %v97 = vld [vmem:[#allocation2 + $0x114] sm:$0xff]
    %v98 = vld [vmem:[#allocation2 + $0x11c] sm:$0xf]
    %v99 = vld [vmem:[#allocation2 + $0x120] sm:$0xff]
    %v100 = vld [vmem:[#allocation2 + $0x128] sm:$0xf]
    %v101 = vld [vmem:[#allocation2 + $0x12c] sm:$0xff]
    %v102 = vld [vmem:[#allocation2 + $0x134] sm:$0xf]
    %v103 = vld [vmem:[#allocation2 + $0x138] sm:$0xff]
    %v104 = vld [vmem:[#allocation2 + $0x140] sm:$0xf]
    %v105 = vld [vmem:[#allocation2 + $0x144] sm:$0xff]
    %v106 = vld [vmem:[#allocation2 + $0x14c] sm:$0xf]
    %v107 = vld [vmem:[#allocation2 + $0x150] sm:$0xff]
    %v108 = vld [vmem:[#allocation2 + $0x158] sm:$0xf]
    %v109 = vld [vmem:[#allocation2 + $0x15c] sm:$0xff]
    %v110 = vld [vmem:[#allocation2 + $0x164] sm:$0xf]
    %v111 = vld [vmem:[#allocation2 + $0x168] sm:$0xff]
    %v112 = vld [vmem:[#allocation2 + $0x170] sm:$0xf]
    %v113 = vld [vmem:[#allocation2 + $0x174] sm:$0xff]
    %v114 = vld [vmem:[#allocation2 + $0x17c] sm:$0xf]
    %v115 = vld [vmem:[#allocation2 + $0x180] sm:$0xff]
    %v116 = vld [vmem:[#allocation2 + $0x188] sm:$0xf]
    %v117 = vld [vmem:[#allocation2 + $0x18c] sm:$0xff]
    %v118 = vld [vmem:[#allocation2 + $0x194] sm:$0xf]
    %v119 = vld [vmem:[#allocation2 + $0x198] sm:$0xff]
    %v120 = vld [vmem:[#allocation2 + $0x1a0] sm:$0xf]
    %v121 = vld [vmem:[#allocation2 + $0x1a4] sm:$0xff]
    %v122 = vld [vmem:[#allocation2 + $0x1ac] sm:$0xf]
    %v123 = vld [vmem:[#allocation2 + $0x1b0] sm:$0xff]
    %v124 = vld [vmem:[#allocation2 + $0x1b8] sm:$0xf]
    %v125 = vld [vmem:[#allocation2 + $0x1bc] sm:$0xff]
    %v126 = vld [vmem:[#allocation2 + $0x1c4] sm:$0xf]
    %v127 = vld [vmem:[#allocation2 + $0x1c8] sm:$0xff]
    %v128 = vld [vmem:[#allocation2 + $0x1d0] sm:$0xf]
    %v129 = vld [vmem:[#allocation2 + $0x1d4] sm:$0xff]
    %v130 = vld [vmem:[#allocation2 + $0x1dc] sm:$0xf]
    %v131 = vld [vmem:[#allocation2 + $0x1e0] sm:$0xff]
    %v132 = vld [vmem:[#allocation2 + $0x1e8] sm:$0xf]
    %v133 = vld [vmem:[#allocation2 + $0x1ec] sm:$0xff]
    %v134 = vld [vmem:[#allocation2 + $0x1f4] sm:$0xf]
    %v135 = vld [vmem:[#allocation2 + $0x1f8] sm:$0xff]
    %v136 = vld [vmem:[#allocation2 + $0x200] sm:$0xf]
    %v137 = vld [vmem:[#allocation2 + $0x204] sm:$0xff]
    %v138 = vld [vmem:[#allocation2 + $0x20c] sm:$0xf]
    %v139 = vld [vmem:[#allocation2 + $0x210] sm:$0xff]
    %v140 = vld [vmem:[#allocation2 + $0x218] sm:$0xf]
    %v141 = vld [vmem:[#allocation2 + $0x21c] sm:$0xff]
    %v142 = vld [vmem:[#allocation2 + $0x224] sm:$0xf]
    %v143 = vld [vmem:[#allocation2 + $0x228] sm:$0xff]
    %v144 = vld [vmem:[#allocation2 + $0x230] sm:$0xf]
    %v145 = vld [vmem:[#allocation2 + $0x234] sm:$0xff]
    %v146 = vld [vmem:[#allocation2 + $0x23c] sm:$0xf]
    %v147 = vld [vmem:[#allocation2 + $0x240] sm:$0xff]
    %v148 = vld [vmem:[#allocation2 + $0x248] sm:$0xf]
    %v149 = vld [vmem:[#allocation2 + $0x24c] sm:$0xff]
    %v150 = vld [vmem:[#allocation2 + $0x254] sm:$0xf]
    %v151 = vld [vmem:[#allocation2 + $0x258] sm:$0xff]
    %v152 = vld [vmem:[#allocation2 + $0x260] sm:$0xf]
    %v153 = vld [vmem:[#allocation2 + $0x264] sm:$0xff]
    %v154 = vld [vmem:[#allocation2 + $0x26c] sm:$0xf]
    %v155 = vld [vmem:[#allocation2 + $0x270] sm:$0xff]
    %v156 = vld [vmem:[#allocation2 + $0x278] sm:$0xf]
    %v157 = vld [vmem:[#allocation2 + $0x27c] sm:$0xff]
    %v158 = vld [vmem:[#allocation2 + $0x284] sm:$0xf]
    %v159 = vld [vmem:[#allocation2 + $0x288] sm:$0xff]
    %v160 = vld [vmem:[#allocation2 + $0x290] sm:$0xf]
    %v161 = vld [vmem:[#allocation2 + $0x294] sm:$0xff]
    %v162 = vld [vmem:[#allocation2 + $0x29c] sm:$0xf]
    %v163 = vld [vmem:[#allocation2 + $0x2a0] sm:$0xff]
    %v164 = vld [vmem:[#allocation2 + $0x2a8] sm:$0xf]
    %v165 = vld [vmem:[#allocation2 + $0x2ac] sm:$0xff]
    %v166 = vld [vmem:[#allocation2 + $0x2b4] sm:$0xf]
    %v167 = vld [vmem:[#allocation2 + $0x2b8] sm:$0xff]
    %v168 = vld [vmem:[#allocation2 + $0x2c0] sm:$0xf]
    %v169 = vld [vmem:[#allocation2 + $0x2c4] sm:$0xff]
    %v170 = vld [vmem:[#allocation2 + $0x2cc] sm:$0xf]
    %v171 = vld [vmem:[#allocation2 + $0x2d0] sm:$0xff]
    %v172 = vld [vmem:[#allocation2 + $0x2d8] sm:$0xf]
    %v173 = vld [vmem:[#allocation2 + $0x2dc] sm:$0xff]
    %v174 = vld [vmem:[#allocation2 + $0x2e4] sm:$0xf]
    %v175 = vld [vmem:[#allocation2 + $0x2e8] sm:$0xff]
    %v176 = vld [vmem:[#allocation2 + $0x2f0] sm:$0xf]
    %v177 = vld [vmem:[#allocation2 + $0x2f4] sm:$0xff]
    %v178 = vld [vmem:[#allocation2 + $0x2fc] sm:$0xf]
    %v179 = vld [vmem:[#allocation2 + $0x300] sm:$0xff]
    %v180 = vld [vmem:[#allocation2 + $0x308] sm:$0xf]
    %v181 = vld [vmem:[#allocation2 + $0x30c] sm:$0xff]
    %v182 = vld [vmem:[#allocation2 + $0x314] sm:$0xf]
    %v183 = vld [vmem:[#allocation2 + $0x318] sm:$0xff]
    %v184 = vld [vmem:[#allocation2 + $0x320] sm:$0xf]
    %v185 = vld [vmem:[#allocation2 + $0x324] sm:$0xff]
    %v186 = vld [vmem:[#allocation2 + $0x32c] sm:$0xf]
    %v187 = vld [vmem:[#allocation2 + $0x330] sm:$0xff]
    %v188 = vld [vmem:[#allocation2 + $0x338] sm:$0xf]
    %v189 = vld [vmem:[#allocation2 + $0x33c] sm:$0xff]
    %v190 = vld [vmem:[#allocation2 + $0x344] sm:$0xf]
    %v191 = vld [vmem:[#allocation2 + $0x348] sm:$0xff]
    %v192 = vld [vmem:[#allocation2 + $0x350] sm:$0xf]
    %v193 = vld [vmem:[#allocation2 + $0x354] sm:$0xff]
    %v194 = vld [vmem:[#allocation2 + $0x35c] sm:$0xf]
    %v195 = vld [vmem:[#allocation2 + $0x360] sm:$0xff]
    %v196 = vld [vmem:[#allocation2 + $0x368] sm:$0xf]
    %v197 = vld [vmem:[#allocation2 + $0x36c] sm:$0xff]
    %v198 = vld [vmem:[#allocation2 + $0x374] sm:$0xf]
    %v199 = vld [vmem:[#allocation2 + $0x378] sm:$0xff]
    %v200 = vld [vmem:[#allocation2 + $0x380] sm:$0xf]
    %v201 = vld [vmem:[#allocation2 + $0x384] sm:$0xff]
    %v202 = vld [vmem:[#allocation2 + $0x38c] sm:$0xf]
    %v203 = vld [vmem:[#allocation2 + $0x390] sm:$0xff]
    %v204 = vld [vmem:[#allocation2 + $0x398] sm:$0xf]
    %v205 = vld [vmem:[#allocation2 + $0x39c] sm:$0xff]
    %v206 = vld [vmem:[#allocation2 + $0x3a4] sm:$0xf]
    %v207 = vld [vmem:[#allocation2 + $0x3a8] sm:$0xff]
    %v208 = vld [vmem:[#allocation2 + $0x3b0] sm:$0xf]
    %v209 = vld [vmem:[#allocation2 + $0x3b4] sm:$0xff]
    %v210 = vld [vmem:[#allocation2 + $0x3bc] sm:$0xf]
    %v211 = vld [vmem:[#allocation2 + $0x3c0] sm:$0xff]
    %v212 = vld [vmem:[#allocation2 + $0x3c8] sm:$0xf]
    %v213 = vld [vmem:[#allocation2 + $0x3cc] sm:$0xff]
    %v214 = vld [vmem:[#allocation2 + $0x3d4] sm:$0xf]
    %v215 = vld [vmem:[#allocation2 + $0x3d8] sm:$0xff]
    %v216 = vld [vmem:[#allocation2 + $0x3e0] sm:$0xf]
    %v217 = vld [vmem:[#allocation2 + $0x3e4] sm:$0xff]
    %v218 = vld [vmem:[#allocation2 + $0x3ec] sm:$0xf]
    %v219 = vld [vmem:[#allocation2 + $0x3f0] sm:$0xff]
    %v220 = vld [vmem:[#allocation2 + $0x3f8] sm:$0xf]
    %v221 = vld [vmem:[#allocation2 + $0x3fc] sm:$0xff]
    %v222 = vld [vmem:[#allocation2 + $0x404] sm:$0xf]
    %v223 = vld [vmem:[#allocation2 + $0x408] sm:$0xff]
    %v224 = vld [vmem:[#allocation2 + $0x410] sm:$0xf]
    %v225 = vld [vmem:[#allocation2 + $0x414] sm:$0xff]
    %v226 = vld [vmem:[#allocation2 + $0x41c] sm:$0xf]
    %v227 = vld [vmem:[#allocation2 + $0x420] sm:$0xff]
    %v228 = vld [vmem:[#allocation2 + $0x428] sm:$0xf]
    %v229 = vld [vmem:[#allocation2 + $0x42c] sm:$0xff]
    %v230 = vld [vmem:[#allocation2 + $0x434] sm:$0xf]
    %v231 = vld [vmem:[#allocation2 + $0x438] sm:$0xff]
    %v232 = vld [vmem:[#allocation2 + $0x440] sm:$0xf]
    %v233 = vld [vmem:[#allocation2 + $0x444] sm:$0xff]
    %v234 = vld [vmem:[#allocation2 + $0x44c] sm:$0xf]
    %v235 = vld [vmem:[#allocation2 + $0x450] sm:$0xff]
    %v236 = vld [vmem:[#allocation2 + $0x458] sm:$0xf]
    %v237 = vld [vmem:[#allocation2 + $0x45c] sm:$0xff]
    %v238 = vld [vmem:[#allocation2 + $0x464] sm:$0xf]
    %v239 = vld [vmem:[#allocation2 + $0x468] sm:$0xff]
    %v240 = vld [vmem:[#allocation2 + $0x470] sm:$0xf]
    %v241 = vld [vmem:[#allocation2 + $0x474] sm:$0xff]
    %v242 = vld [vmem:[#allocation2 + $0x47c] sm:$0xf]
    %v243 = vld [vmem:[#allocation2 + $0x480] sm:$0xff]
    %v244 = vld [vmem:[#allocation2 + $0x488] sm:$0xf]
    %v245 = vld [vmem:[#allocation2 + $0x48c] sm:$0xff]
    %v246 = vld [vmem:[#allocation2 + $0x494] sm:$0xf]
    %v247 = vld [vmem:[#allocation2 + $0x498] sm:$0xff]
    %v248 = vld [vmem:[#allocation2 + $0x4a0] sm:$0xf]
    %v249 = vld [vmem:[#allocation2 + $0x4a4] sm:$0xff]
    %v250 = vld [vmem:[#allocation2 + $0x4ac] sm:$0xf]
    %v251 = vld [vmem:[#allocation2 + $0x4b0] sm:$0xff]
    %v252 = vld [vmem:[#allocation2 + $0x4b8] sm:$0xf]
    %v253 = vld [vmem:[#allocation2 + $0x4bc] sm:$0xff]
    %v254 = vld [vmem:[#allocation2 + $0x4c4] sm:$0xf]
    %v255 = vld [vmem:[#allocation2 + $0x4c8] sm:$0xff]
    %v256 = vld [vmem:[#allocation2 + $0x4d0] sm:$0xf]
    %v257 = vld [vmem:[#allocation2 + $0x4d4] sm:$0xff]
    %v258 = vld [vmem:[#allocation2 + $0x4dc] sm:$0xf]
    %v259 = vld [vmem:[#allocation2 + $0x4e0] sm:$0xff]
    %v260 = vld [vmem:[#allocation2 + $0x4e8] sm:$0xf]
    %v261 = vld [vmem:[#allocation2 + $0x4ec] sm:$0xff]
    %v262 = vld [vmem:[#allocation2 + $0x4f4] sm:$0xf]
    %v263 = vld [vmem:[#allocation2 + $0x4f8] sm:$0xff]
    %v264 = vld [vmem:[#allocation2 + $0x500] sm:$0xf]
    %v265 = vld [vmem:[#allocation2 + $0x504] sm:$0xff]
    %v266 = vld [vmem:[#allocation2 + $0x50c] sm:$0xf]
    %v267 = vld [vmem:[#allocation2 + $0x510] sm:$0xff]
    %v268 = vld [vmem:[#allocation2 + $0x518] sm:$0xf]
    %v269 = vld [vmem:[#allocation2 + $0x51c] sm:$0xff]
    %v270 = vld [vmem:[#allocation2 + $0x524] sm:$0xf]
    %v271 = vld [vmem:[#allocation2 + $0x528] sm:$0xff]
    %v272 = vld [vmem:[#allocation2 + $0x530] sm:$0xf]
    %v273 = vld [vmem:[#allocation2 + $0x534] sm:$0xff]
    %v274 = vld [vmem:[#allocation2 + $0x53c] sm:$0xf]
    %v275 = vld [vmem:[%s2] sm:$0x7]
    %v277 = vperm.slane %v275, 0
    %v278 = vperm.slane %v275, 1
    %v279 = vperm.slane %v275, 2
    %v291 = vunpack.c.l.b16 %v43
    %v292 = vunpack.c.h.b16 %v43
    %v293 = vunpack.c.l.b16 %v44
    %v294 = vunpack.c.h.b16 %v44
    %v295 = vunpack.c.l.b16 %v45
    %v296 = vunpack.c.h.b16 %v45
    %v297 = vunpack.c.l.b16 %v46
    %v298 = vunpack.c.l.b16 %v47
    %v299 = vunpack.c.h.b16 %v47
    %v300 = vunpack.c.l.b16 %v48
    %v301 = vunpack.c.h.b16 %v48
    %v302 = vunpack.c.l.b16 %v49
    %v303 = vunpack.c.h.b16 %v49
    %v304 = vunpack.c.l.b16 %v50
    %v305 = vpack.c.b16 %v298, %v291
    %v306 = vpack.c.b16 %v299, %v292
    %v307 = vpack.c.b16 %v300, %v293
    %v308 = vpack.c.b16 %v301, %v294
    %v309 = vpack.c.b16 %v302, %v295
    %v310 = vpack.c.b16 %v303, %v296
    %v311 = vpack.c.b16 %v304, %v297
    %v543 = vunpack.c.l.b16 %v51
    %v544 = vunpack.c.h.b16 %v51
    %v545 = vunpack.c.l.b16 %v52
    %v546 = vunpack.c.l.b16 %v53
    %v547 = vunpack.c.h.b16 %v53
    %v548 = vunpack.c.l.b16 %v54
    %v549 = vunpack.c.l.b16 %v55
    %v550 = vunpack.c.h.b16 %v55
    %v551 = vunpack.c.l.b16 %v56
    %v552 = vunpack.c.l.b16 %v57
    %v553 = vunpack.c.h.b16 %v57
    %v554 = vunpack.c.l.b16 %v58
    %v555 = vunpack.c.l.b16 %v59
    %v556 = vunpack.c.h.b16 %v59
    %v557 = vunpack.c.l.b16 %v60
    %v558 = vunpack.c.l.b16 %v61
    %v559 = vunpack.c.h.b16 %v61
    %v560 = vunpack.c.l.b16 %v62
    %v561 = vunpack.c.l.b16 %v63
    %v562 = vunpack.c.h.b16 %v63
    %v563 = vunpack.c.l.b16 %v64
    %v564 = vunpack.c.l.b16 %v65
    %v565 = vunpack.c.h.b16 %v65
    %v566 = vunpack.c.l.b16 %v66
    %v567 = vunpack.c.l.b16 %v67
    %v568 = vunpack.c.h.b16 %v67
    %v569 = vunpack.c.l.b16 %v68
    %v570 = vunpack.c.l.b16 %v69
    %v571 = vunpack.c.h.b16 %v69
    %v572 = vunpack.c.l.b16 %v70
    %v573 = vunpack.c.l.b16 %v71
    %v574 = vunpack.c.h.b16 %v71
    %v575 = vunpack.c.l.b16 %v72
    %v576 = vunpack.c.l.b16 %v73
    %v577 = vunpack.c.h.b16 %v73
    %v578 = vunpack.c.l.b16 %v74
    %v579 = vunpack.c.l.b16 %v75
    %v580 = vunpack.c.h.b16 %v75
    %v581 = vunpack.c.l.b16 %v76
    %v582 = vunpack.c.l.b16 %v77
    %v583 = vunpack.c.h.b16 %v77
    %v584 = vunpack.c.l.b16 %v78
    %v585 = vunpack.c.l.b16 %v79
    %v586 = vunpack.c.h.b16 %v79
    %v587 = vunpack.c.l.b16 %v80
    %v588 = vunpack.c.l.b16 %v81
    %v589 = vunpack.c.h.b16 %v81
    %v590 = vunpack.c.l.b16 %v82
    %v591 = vunpack.c.l.b16 %v83
    %v592 = vunpack.c.h.b16 %v83
    %v593 = vunpack.c.l.b16 %v84
    %v594 = vunpack.c.l.b16 %v85
    %v595 = vunpack.c.h.b16 %v85
    %v596 = vunpack.c.l.b16 %v86
    %v597 = vunpack.c.l.b16 %v87
    %v598 = vunpack.c.h.b16 %v87
    %v599 = vunpack.c.l.b16 %v88
    %v600 = vunpack.c.l.b16 %v89
    %v601 = vunpack.c.h.b16 %v89
    %v602 = vunpack.c.l.b16 %v90
    %v603 = vunpack.c.l.b16 %v91
    %v604 = vunpack.c.h.b16 %v91
    %v605 = vunpack.c.l.b16 %v92
    %v606 = vunpack.c.l.b16 %v93
    %v607 = vunpack.c.h.b16 %v93
    %v608 = vunpack.c.l.b16 %v94
    %v609 = vunpack.c.l.b16 %v95
    %v610 = vunpack.c.h.b16 %v95
    %v611 = vunpack.c.l.b16 %v96
    %v612 = vunpack.c.l.b16 %v97
    %v613 = vunpack.c.h.b16 %v97
    %v614 = vunpack.c.l.b16 %v98
    %v615 = vunpack.c.l.b16 %v99
    %v616 = vunpack.c.h.b16 %v99
    %v617 = vunpack.c.l.b16 %v100
    %v618 = vunpack.c.l.b16 %v101
    %v619 = vunpack.c.h.b16 %v101
    %v620 = vunpack.c.l.b16 %v102
    %v621 = vunpack.c.l.b16 %v103
    %v622 = vunpack.c.h.b16 %v103
    %v623 = vunpack.c.l.b16 %v104
    %v624 = vunpack.c.l.b16 %v105
    %v625 = vunpack.c.h.b16 %v105
    %v626 = vunpack.c.l.b16 %v106
    %v627 = vunpack.c.l.b16 %v107
    %v628 = vunpack.c.h.b16 %v107
    %v629 = vunpack.c.l.b16 %v108
    %v630 = vunpack.c.l.b16 %v109
    %v631 = vunpack.c.h.b16 %v109
    %v632 = vunpack.c.l.b16 %v110
    %v633 = vunpack.c.l.b16 %v111
    %v634 = vunpack.c.h.b16 %v111
    %v635 = vunpack.c.l.b16 %v112
    %v636 = vunpack.c.l.b16 %v113
    %v637 = vunpack.c.h.b16 %v113
    %v638 = vunpack.c.l.b16 %v114
    %v639 = vunpack.c.l.b16 %v115
    %v640 = vunpack.c.h.b16 %v115
    %v641 = vunpack.c.l.b16 %v116
    %v642 = vunpack.c.l.b16 %v117
    %v643 = vunpack.c.h.b16 %v117
    %v644 = vunpack.c.l.b16 %v118
    %v645 = vunpack.c.l.b16 %v119
    %v646 = vunpack.c.h.b16 %v119
    %v647 = vunpack.c.l.b16 %v120
    %v648 = vunpack.c.l.b16 %v121
    %v649 = vunpack.c.h.b16 %v121
    %v650 = vunpack.c.l.b16 %v122
    %v651 = vunpack.c.l.b16 %v123
    %v652 = vunpack.c.h.b16 %v123
    %v653 = vunpack.c.l.b16 %v124
    %v654 = vunpack.c.l.b16 %v125
    %v655 = vunpack.c.h.b16 %v125
    %v656 = vunpack.c.l.b16 %v126
    %v657 = vunpack.c.l.b16 %v127
    %v658 = vunpack.c.h.b16 %v127
    %v659 = vunpack.c.l.b16 %v128
    %v660 = vunpack.c.l.b16 %v129
    %v661 = vunpack.c.h.b16 %v129
    %v662 = vunpack.c.l.b16 %v130
    %v663 = vunpack.c.l.b16 %v131
    %v664 = vunpack.c.h.b16 %v131
    %v665 = vunpack.c.l.b16 %v132
    %v666 = vunpack.c.l.b16 %v133
    %v667 = vunpack.c.h.b16 %v133
    %v668 = vunpack.c.l.b16 %v134
    %v669 = vunpack.c.l.b16 %v135
    %v670 = vunpack.c.h.b16 %v135
    %v671 = vunpack.c.l.b16 %v136
    %v672 = vunpack.c.l.b16 %v137
    %v673 = vunpack.c.h.b16 %v137
    %v674 = vunpack.c.l.b16 %v138
    %v675 = vunpack.c.l.b16 %v139
    %v676 = vunpack.c.h.b16 %v139
    %v677 = vunpack.c.l.b16 %v140
    %v678 = vunpack.c.l.b16 %v141
    %v679 = vunpack.c.h.b16 %v141
    %v680 = vunpack.c.l.b16 %v142
    %v681 = vunpack.c.l.b16 %v143
    %v682 = vunpack.c.h.b16 %v143
    %v683 = vunpack.c.l.b16 %v144
    %v684 = vunpack.c.l.b16 %v145
    %v685 = vunpack.c.h.b16 %v145
    %v686 = vunpack.c.l.b16 %v146
    %v687 = vunpack.c.l.b16 %v147
    %v688 = vunpack.c.h.b16 %v147
    %v689 = vunpack.c.l.b16 %v148
    %v690 = vunpack.c.l.b16 %v149
    %v691 = vunpack.c.h.b16 %v149
    %v692 = vunpack.c.l.b16 %v150
    %v693 = vunpack.c.l.b16 %v151
    %v694 = vunpack.c.h.b16 %v151
    %v695 = vunpack.c.l.b16 %v152
    %v696 = vunpack.c.l.b16 %v153
    %v697 = vunpack.c.h.b16 %v153
    %v698 = vunpack.c.l.b16 %v154
    %v699 = vunpack.c.l.b16 %v155
    %v700 = vunpack.c.h.b16 %v155
    %v701 = vunpack.c.l.b16 %v156
    %v702 = vunpack.c.l.b16 %v157
    %v703 = vunpack.c.h.b16 %v157
    %v704 = vunpack.c.l.b16 %v158
    %v705 = vunpack.c.l.b16 %v159
    %v706 = vunpack.c.h.b16 %v159
    %v707 = vunpack.c.l.b16 %v160
    %v708 = vunpack.c.l.b16 %v161
    %v709 = vunpack.c.h.b16 %v161
    %v710 = vunpack.c.l.b16 %v162
    %v711 = vunpack.c.l.b16 %v163
    %v712 = vunpack.c.h.b16 %v163
    %v713 = vunpack.c.l.b16 %v164
    %v714 = vunpack.c.l.b16 %v165
    %v715 = vunpack.c.h.b16 %v165
    %v716 = vunpack.c.l.b16 %v166
    %v717 = vunpack.c.l.b16 %v167
    %v718 = vunpack.c.h.b16 %v167
    %v719 = vunpack.c.l.b16 %v168
    %v720 = vunpack.c.l.b16 %v169
    %v721 = vunpack.c.h.b16 %v169
    %v722 = vunpack.c.l.b16 %v170
    %v723 = vunpack.c.l.b16 %v171
    %v724 = vunpack.c.h.b16 %v171
    %v725 = vunpack.c.l.b16 %v172
    %v726 = vunpack.c.l.b16 %v173
    %v727 = vunpack.c.h.b16 %v173
    %v728 = vunpack.c.l.b16 %v174
    %v729 = vunpack.c.l.b16 %v175
    %v730 = vunpack.c.h.b16 %v175
    %v731 = vunpack.c.l.b16 %v176
    %v732 = vunpack.c.l.b16 %v177
    %v733 = vunpack.c.h.b16 %v177
    %v734 = vunpack.c.l.b16 %v178
    %v735 = vunpack.c.l.b16 %v179
    %v736 = vunpack.c.h.b16 %v179
    %v737 = vunpack.c.l.b16 %v180
    %v738 = vunpack.c.l.b16 %v181
    %v739 = vunpack.c.h.b16 %v181
    %v740 = vunpack.c.l.b16 %v182
    %v741 = vunpack.c.l.b16 %v183
    %v742 = vunpack.c.h.b16 %v183
    %v743 = vunpack.c.l.b16 %v184
    %v744 = vunpack.c.l.b16 %v185
    %v745 = vunpack.c.h.b16 %v185
    %v746 = vunpack.c.l.b16 %v186
    %v747 = vunpack.c.l.b16 %v187
    %v748 = vunpack.c.h.b16 %v187
    %v749 = vunpack.c.l.b16 %v188
    %v750 = vunpack.c.l.b16 %v189
    %v751 = vunpack.c.h.b16 %v189
    %v752 = vunpack.c.l.b16 %v190
    %v753 = vunpack.c.l.b16 %v191
    %v754 = vunpack.c.h.b16 %v191
    %v755 = vunpack.c.l.b16 %v192
    %v756 = vunpack.c.l.b16 %v193
    %v757 = vunpack.c.h.b16 %v193
    %v758 = vunpack.c.l.b16 %v194
    %v759 = vunpack.c.l.b16 %v195
    %v760 = vunpack.c.h.b16 %v195
    %v761 = vunpack.c.l.b16 %v196
    %v762 = vunpack.c.l.b16 %v197
    %v763 = vunpack.c.h.b16 %v197
    %v764 = vunpack.c.l.b16 %v198
    %v765 = vunpack.c.l.b16 %v199
    %v766 = vunpack.c.h.b16 %v199
    %v767 = vunpack.c.l.b16 %v200
    %v768 = vunpack.c.l.b16 %v201
    %v769 = vunpack.c.h.b16 %v201
    %v770 = vunpack.c.l.b16 %v202
    %v771 = vunpack.c.l.b16 %v203
    %v772 = vunpack.c.h.b16 %v203
    %v773 = vunpack.c.l.b16 %v204
    %v774 = vunpack.c.l.b16 %v205
    %v775 = vunpack.c.h.b16 %v205
    %v776 = vunpack.c.l.b16 %v206
    %v777 = vunpack.c.l.b16 %v207
    %v778 = vunpack.c.h.b16 %v207
    %v779 = vunpack.c.l.b16 %v208
    %v780 = vunpack.c.l.b16 %v209
    %v781 = vunpack.c.h.b16 %v209
    %v782 = vunpack.c.l.b16 %v210
    %v783 = vunpack.c.l.b16 %v211
    %v784 = vunpack.c.h.b16 %v211
    %v785 = vunpack.c.l.b16 %v212
    %v786 = vunpack.c.l.b16 %v213
    %v787 = vunpack.c.h.b16 %v213
    %v788 = vunpack.c.l.b16 %v214
    %v789 = vunpack.c.l.b16 %v215
    %v790 = vunpack.c.h.b16 %v215
    %v791 = vunpack.c.l.b16 %v216
    %v792 = vunpack.c.l.b16 %v217
    %v793 = vunpack.c.h.b16 %v217
    %v794 = vunpack.c.l.b16 %v218
    %v795 = vunpack.c.l.b16 %v219
    %v796 = vunpack.c.h.b16 %v219
    %v797 = vunpack.c.l.b16 %v220
    %v798 = vunpack.c.l.b16 %v221
    %v799 = vunpack.c.h.b16 %v221
    %v800 = vunpack.c.l.b16 %v222
    %v801 = vunpack.c.l.b16 %v223
    %v802 = vunpack.c.h.b16 %v223
    %v803 = vunpack.c.l.b16 %v224
    %v804 = vunpack.c.l.b16 %v225
    %v805 = vunpack.c.h.b16 %v225
    %v806 = vunpack.c.l.b16 %v226
    %v807 = vunpack.c.l.b16 %v227
    %v808 = vunpack.c.h.b16 %v227
    %v809 = vunpack.c.l.b16 %v228
    %v810 = vunpack.c.l.b16 %v229
    %v811 = vunpack.c.h.b16 %v229
    %v812 = vunpack.c.l.b16 %v230
    %v813 = vunpack.c.l.b16 %v231
    %v814 = vunpack.c.h.b16 %v231
    %v815 = vunpack.c.l.b16 %v232
    %v816 = vunpack.c.l.b16 %v233
    %v817 = vunpack.c.h.b16 %v233
    %v818 = vunpack.c.l.b16 %v234
    %v819 = vunpack.c.l.b16 %v235
    %v820 = vunpack.c.h.b16 %v235
    %v821 = vunpack.c.l.b16 %v236
    %v822 = vunpack.c.l.b16 %v237
    %v823 = vunpack.c.h.b16 %v237
    %v824 = vunpack.c.l.b16 %v238
    %v825 = vunpack.c.l.b16 %v239
    %v826 = vunpack.c.h.b16 %v239
    %v827 = vunpack.c.l.b16 %v240
    %v828 = vunpack.c.l.b16 %v241
    %v829 = vunpack.c.h.b16 %v241
    %v830 = vunpack.c.l.b16 %v242
    %v831 = vunpack.c.l.b16 %v243
    %v832 = vunpack.c.h.b16 %v243
    %v833 = vunpack.c.l.b16 %v244
    %v834 = vunpack.c.l.b16 %v245
    %v835 = vunpack.c.h.b16 %v245
    %v836 = vunpack.c.l.b16 %v246
    %v837 = vunpack.c.l.b16 %v247
    %v838 = vunpack.c.h.b16 %v247
    %v839 = vunpack.c.l.b16 %v248
    %v840 = vunpack.c.l.b16 %v249
    %v841 = vunpack.c.h.b16 %v249
    %v842 = vunpack.c.l.b16 %v250
    %v843 = vunpack.c.l.b16 %v251
    %v844 = vunpack.c.h.b16 %v251
    %v845 = vunpack.c.l.b16 %v252
    %v846 = vunpack.c.l.b16 %v253
    %v847 = vunpack.c.h.b16 %v253
    %v848 = vunpack.c.l.b16 %v254
    %v849 = vunpack.c.l.b16 %v255
    %v850 = vunpack.c.h.b16 %v255
    %v851 = vunpack.c.l.b16 %v256
    %v852 = vunpack.c.l.b16 %v257
    %v853 = vunpack.c.h.b16 %v257
    %v854 = vunpack.c.l.b16 %v258
    %v855 = vunpack.c.l.b16 %v259
    %v856 = vunpack.c.h.b16 %v259
    %v857 = vunpack.c.l.b16 %v260
    %v858 = vunpack.c.l.b16 %v261
    %v859 = vunpack.c.h.b16 %v261
    %v860 = vunpack.c.l.b16 %v262
    %v861 = vunpack.c.l.b16 %v263
    %v862 = vunpack.c.h.b16 %v263
    %v863 = vunpack.c.l.b16 %v264
    %v864 = vunpack.c.l.b16 %v265
    %v865 = vunpack.c.h.b16 %v265
    %v866 = vunpack.c.l.b16 %v266
    %v867 = vunpack.c.l.b16 %v267
    %v868 = vunpack.c.h.b16 %v267
    %v869 = vunpack.c.l.b16 %v268
    %v870 = vunpack.c.l.b16 %v269
    %v871 = vunpack.c.h.b16 %v269
    %v872 = vunpack.c.l.b16 %v270
    %v873 = vunpack.c.l.b16 %v271
    %v874 = vunpack.c.h.b16 %v271
    %v875 = vunpack.c.l.b16 %v272
    %v876 = vunpack.c.l.b16 %v273
    %v877 = vunpack.c.h.b16 %v273
    %v878 = vunpack.c.l.b16 %v274
    %v879 = vpack.c.b16 %v546, %v543
    %v880 = vpack.c.b16 %v547, %v544
    %v881 = vpack.c.b16 %v548, %v545
    %v882 = vpack.c.b16 %v552, %v549
    %v883 = vpack.c.b16 %v553, %v550
    %v884 = vpack.c.b16 %v554, %v551
    %v885 = vpack.c.b16 %v558, %v555
    %v886 = vpack.c.b16 %v559, %v556
    %v887 = vpack.c.b16 %v560, %v557
    %v888 = vpack.c.b16 %v564, %v561
    %v889 = vpack.c.b16 %v565, %v562
    %v890 = vpack.c.b16 %v566, %v563
    %v891 = vpack.c.b16 %v570, %v567
    %v892 = vpack.c.b16 %v571, %v568
    %v893 = vpack.c.b16 %v572, %v569
    %v894 = vpack.c.b16 %v576, %v573
    %v895 = vpack.c.b16 %v577, %v574
    %v896 = vpack.c.b16 %v578, %v575
    %v897 = vpack.c.b16 %v582, %v579
    %v898 = vpack.c.b16 %v583, %v580
    %v899 = vpack.c.b16 %v584, %v581
    %v900 = vpack.c.b16 %v588, %v585
    %v901 = vpack.c.b16 %v589, %v586
    %v902 = vpack.c.b16 %v590, %v587
    %v903 = vpack.c.b16 %v594, %v591
    %v904 = vpack.c.b16 %v595, %v592
    %v905 = vpack.c.b16 %v596, %v593
    %v906 = vpack.c.b16 %v600, %v597
    %v907 = vpack.c.b16 %v601, %v598
    %v908 = vpack.c.b16 %v602, %v599
    %v909 = vpack.c.b16 %v606, %v603
    %v910 = vpack.c.b16 %v607, %v604
    %v911 = vpack.c.b16 %v608, %v605
    %v912 = vpack.c.b16 %v612, %v609
    %v913 = vpack.c.b16 %v613, %v610
    %v914 = vpack.c.b16 %v614, %v611
    %v915 = vpack.c.b16 %v618, %v615
    %v916 = vpack.c.b16 %v619, %v616
    %v917 = vpack.c.b16 %v620, %v617
    %v918 = vpack.c.b16 %v624, %v621
    %v919 = vpack.c.b16 %v625, %v622
    %v920 = vpack.c.b16 %v626, %v623
    %v921 = vpack.c.b16 %v630, %v627
    %v922 = vpack.c.b16 %v631, %v628
    %v923 = vpack.c.b16 %v632, %v629
    %v924 = vpack.c.b16 %v636, %v633
    %v925 = vpack.c.b16 %v637, %v634
    %v926 = vpack.c.b16 %v638, %v635
    %v927 = vpack.c.b16 %v642, %v639
    %v928 = vpack.c.b16 %v643, %v640
    %v929 = vpack.c.b16 %v644, %v641
    %v930 = vpack.c.b16 %v648, %v645
    %v931 = vpack.c.b16 %v649, %v646
    %v932 = vpack.c.b16 %v650, %v647
    %v933 = vpack.c.b16 %v654, %v651
    %v934 = vpack.c.b16 %v655, %v652
    %v935 = vpack.c.b16 %v656, %v653
    %v936 = vpack.c.b16 %v660, %v657
    %v937 = vpack.c.b16 %v661, %v658
    %v938 = vpack.c.b16 %v662, %v659
    %v939 = vpack.c.b16 %v666, %v663
    %v940 = vpack.c.b16 %v667, %v664
    %v941 = vpack.c.b16 %v668, %v665
    %v942 = vpack.c.b16 %v672, %v669
    %v943 = vpack.c.b16 %v673, %v670
    %v944 = vpack.c.b16 %v674, %v671
    %v945 = vpack.c.b16 %v678, %v675
    %v946 = vpack.c.b16 %v679, %v676
    %v947 = vpack.c.b16 %v680, %v677
    %v948 = vpack.c.b16 %v684, %v681
    %v949 = vpack.c.b16 %v685, %v682
    %v950 = vpack.c.b16 %v686, %v683
    %v951 = vpack.c.b16 %v690, %v687
    %v952 = vpack.c.b16 %v691, %v688
    %v953 = vpack.c.b16 %v692, %v689
    %v954 = vpack.c.b16 %v696, %v693
    %v955 = vpack.c.b16 %v697, %v694
    %v956 = vpack.c.b16 %v698, %v695
    %v957 = vpack.c.b16 %v702, %v699
    %v958 = vpack.c.b16 %v703, %v700
    %v959 = vpack.c.b16 %v704, %v701
    %v960 = vpack.c.b16 %v708, %v705
    %v961 = vpack.c.b16 %v709, %v706
    %v962 = vpack.c.b16 %v710, %v707
    %v963 = vpack.c.b16 %v714, %v711
    %v964 = vpack.c.b16 %v715, %v712
    %v965 = vpack.c.b16 %v716, %v713
    %v966 = vpack.c.b16 %v720, %v717
    %v967 = vpack.c.b16 %v721, %v718
    %v968 = vpack.c.b16 %v722, %v719
    %v969 = vpack.c.b16 %v726, %v723
    %v970 = vpack.c.b16 %v727, %v724
    %v971 = vpack.c.b16 %v728, %v725
    %v972 = vpack.c.b16 %v732, %v729
    %v973 = vpack.c.b16 %v733, %v730
    %v974 = vpack.c.b16 %v734, %v731
    %v975 = vpack.c.b16 %v738, %v735
    %v976 = vpack.c.b16 %v739, %v736
    %v977 = vpack.c.b16 %v740, %v737
    %v978 = vpack.c.b16 %v744, %v741
    %v979 = vpack.c.b16 %v745, %v742
    %v980 = vpack.c.b16 %v746, %v743
    %v981 = vpack.c.b16 %v750, %v747
    %v982 = vpack.c.b16 %v751, %v748
    %v983 = vpack.c.b16 %v752, %v749
    %v984 = vpack.c.b16 %v756, %v753
    %v985 = vpack.c.b16 %v757, %v754
    %v986 = vpack.c.b16 %v758, %v755
    %v987 = vpack.c.b16 %v762, %v759
    %v988 = vpack.c.b16 %v763, %v760
    %v989 = vpack.c.b16 %v764, %v761
    %v990 = vpack.c.b16 %v768, %v765
    %v991 = vpack.c.b16 %v769, %v766
    %v992 = vpack.c.b16 %v770, %v767
    %v993 = vpack.c.b16 %v774, %v771
    %v994 = vpack.c.b16 %v775, %v772
    %v995 = vpack.c.b16 %v776, %v773
    %v996 = vpack.c.b16 %v780, %v777
    %v997 = vpack.c.b16 %v781, %v778
    %v998 = vpack.c.b16 %v782, %v779
    %v999 = vpack.c.b16 %v786, %v783
    %v1000 = vpack.c.b16 %v787, %v784
    %v1001 = vpack.c.b16 %v788, %v785
    %v1002 = vpack.c.b16 %v792, %v789
    %v1003 = vpack.c.b16 %v793, %v790
    %v1004 = vpack.c.b16 %v794, %v791
    %v1005 = vpack.c.b16 %v798, %v795
    %v1006 = vpack.c.b16 %v799, %v796
    %v1007 = vpack.c.b16 %v800, %v797
    %v1008 = vpack.c.b16 %v804, %v801
    %v1009 = vpack.c.b16 %v805, %v802
    %v1010 = vpack.c.b16 %v806, %v803
    %v1011 = vpack.c.b16 %v810, %v807
    %v1012 = vpack.c.b16 %v811, %v808
    %v1013 = vpack.c.b16 %v812, %v809
    %v1014 = vpack.c.b16 %v816, %v813
    %v1015 = vpack.c.b16 %v817, %v814
    %v1016 = vpack.c.b16 %v818, %v815
    %v1017 = vpack.c.b16 %v822, %v819
    %v1018 = vpack.c.b16 %v823, %v820
    %v1019 = vpack.c.b16 %v824, %v821
    %v1020 = vpack.c.b16 %v828, %v825
    %v1021 = vpack.c.b16 %v829, %v826
    %v1022 = vpack.c.b16 %v830, %v827
    %v1023 = vpack.c.b16 %v834, %v831
    %v1024 = vpack.c.b16 %v835, %v832
    %v1025 = vpack.c.b16 %v836, %v833
    %v1026 = vpack.c.b16 %v840, %v837
    %v1027 = vpack.c.b16 %v841, %v838
    %v1028 = vpack.c.b16 %v842, %v839
    %v1029 = vpack.c.b16 %v846, %v843
    %v1030 = vpack.c.b16 %v847, %v844
    %v1031 = vpack.c.b16 %v848, %v845
    %v1032 = vpack.c.b16 %v852, %v849
    %v1033 = vpack.c.b16 %v853, %v850
    %v1034 = vpack.c.b16 %v854, %v851
    %v1035 = vpack.c.b16 %v858, %v855
    %v1036 = vpack.c.b16 %v859, %v856
    %v1037 = vpack.c.b16 %v860, %v857
    %v1038 = vpack.c.b16 %v864, %v861
    %v1039 = vpack.c.b16 %v865, %v862
    %v1040 = vpack.c.b16 %v866, %v863
    %v1041 = vpack.c.b16 %v870, %v867
    %v1042 = vpack.c.b16 %v871, %v868
    %v1043 = vpack.c.b16 %v872, %v869
    %v1044 = vpack.c.b16 %v876, %v873
    %v1045 = vpack.c.b16 %v877, %v874
    %v1046 = vpack.c.b16 %v878, %v875
    %1215 = vmatpush.bf16.msra.mxu0 %v900
    %1216 = vmatpush.bf16.msra.mxu0 %v897
    %1217 = vmatpush.bf16.msra.mxu0 %v894
    %1218 = vmatpush.bf16.msra.mxu0 %v891
    %1219 = vmatpush.bf16.msra.mxu0 %v888
    %1220 = vmatpush.bf16.msra.mxu0 %v885
    %1221 = vmatpush.bf16.msra.mxu0 %v882
    %1222 = vmatpush.bf16.msra.mxu0 %v879
    %1223 = vmatmul.bf16.gmra.mxu0 %v305
    %v1224 = vpop.f32.mrf.mxu0
    %v1225 = vadd.f32 %v277, %v1224
    %v1226 = vpop.f32.mrf.mxu0
    %v1227 = vadd.f32 %v277, %v1226
    %1228 = vdwg.mxu0
    %1229 = vmatpush.bf16.msra.mxu0 %v924
    %1230 = vmatpush.bf16.msra.mxu0 %v921
    %1231 = vmatpush.bf16.msra.mxu0 %v918
    %1232 = vmatpush.bf16.msra.mxu0 %v915
    %1233 = vmatpush.bf16.msra.mxu0 %v912
    %1234 = vmatpush.bf16.msra.mxu0 %v909
    %1235 = vmatpush.bf16.msra.mxu0 %v906
    %1236 = vmatpush.bf16.msra.mxu0 %v903
    %1237 = vmatmul.bf16.gmra.mxu0 %v306
    %v1238 = vpop.f32.mrf.mxu0
    %v1239 = vadd.f32 %v1225, %v1238
    %v1240 = vpop.f32.mrf.mxu0
    %v1241 = vadd.f32 %v1227, %v1240
    %1242 = vdwg.mxu0
    %1243 = vmatpush.bf16.msra.mxu0 %v948
    %1244 = vmatpush.bf16.msra.mxu0 %v945
    %1245 = vmatpush.bf16.msra.mxu0 %v942
    %1246 = vmatpush.bf16.msra.mxu0 %v939
    %1247 = vmatpush.bf16.msra.mxu0 %v936
    %1248 = vmatpush.bf16.msra.mxu0 %v933
    %1249 = vmatpush.bf16.msra.mxu0 %v930
    %1250 = vmatpush.bf16.msra.mxu0 %v927
    %1251 = vmatmul.bf16.gmra.mxu0 %v307
    %v1252 = vpop.f32.mrf.mxu0
    %v1253 = vadd.f32 %v1239, %v1252
    %v1254 = vpop.f32.mrf.mxu0
    %v1255 = vadd.f32 %v1241, %v1254
    %1256 = vdwg.mxu0
    %1257 = vmatpush.bf16.msra.mxu0 %v972
    %1258 = vmatpush.bf16.msra.mxu0 %v969
    %1259 = vmatpush.bf16.msra.mxu0 %v966
    %1260 = vmatpush.bf16.msra.mxu0 %v963
    %1261 = vmatpush.bf16.msra.mxu0 %v960
    %1262 = vmatpush.bf16.msra.mxu0 %v957
    %1263 = vmatpush.bf16.msra.mxu0 %v954
    %1264 = vmatpush.bf16.msra.mxu0 %v951
    %1265 = vmatmul.bf16.gmra.mxu0 %v308
    %v1266 = vpop.f32.mrf.mxu0
    %v1267 = vadd.f32 %v1253, %v1266
    %v1268 = vpop.f32.mrf.mxu0
    %v1269 = vadd.f32 %v1255, %v1268
    %1270 = vdwg.mxu0
    %1271 = vmatpush.bf16.msra.mxu0 %v996
    %1272 = vmatpush.bf16.msra.mxu0 %v993
    %1273 = vmatpush.bf16.msra.mxu0 %v990
    %1274 = vmatpush.bf16.msra.mxu0 %v987
    %1275 = vmatpush.bf16.msra.mxu0 %v984
    %1276 = vmatpush.bf16.msra.mxu0 %v981
    %1277 = vmatpush.bf16.msra.mxu0 %v978
    %1278 = vmatpush.bf16.msra.mxu0 %v975
    %1279 = vmatmul.bf16.gmra.mxu0 %v309
    %v1280 = vpop.f32.mrf.mxu0
    %v1281 = vadd.f32 %v1267, %v1280
    %v1282 = vpop.f32.mrf.mxu0
    %v1283 = vadd.f32 %v1269, %v1282
    %1284 = vdwg.mxu0
    %1285 = vmatpush.bf16.msra.mxu0 %v1020
    %1286 = vmatpush.bf16.msra.mxu0 %v1017
    %1287 = vmatpush.bf16.msra.mxu0 %v1014
    %1288 = vmatpush.bf16.msra.mxu0 %v1011
    %1289 = vmatpush.bf16.msra.mxu0 %v1008
    %1290 = vmatpush.bf16.msra.mxu0 %v1005
    %1291 = vmatpush.bf16.msra.mxu0 %v1002
    %1292 = vmatpush.bf16.msra.mxu0 %v999
    %1293 = vmatmul.bf16.gmra.mxu0 %v310
    %v1294 = vpop.f32.mrf.mxu0
    %v1295 = vadd.f32 %v1281, %v1294
    %v1296 = vpop.f32.mrf.mxu0
    %v1297 = vadd.f32 %v1283, %v1296
    %1298 = vdwg.mxu0
    %1299 = vmatpush.bf16.msra.mxu0 %v1044
    %1300 = vmatpush.bf16.msra.mxu0 %v1041
    %1301 = vmatpush.bf16.msra.mxu0 %v1038
    %1302 = vmatpush.bf16.msra.mxu0 %v1035
    %1303 = vmatpush.bf16.msra.mxu0 %v1032
    %1304 = vmatpush.bf16.msra.mxu0 %v1029
    %1305 = vmatpush.bf16.msra.mxu0 %v1026
    %1306 = vmatpush.bf16.msra.mxu0 %v1023
    %1307 = vmatmul.bf16.gmra.mxu0 %v311
    %v1308 = vpop.f32.mrf.mxu0
    %v1309 = vadd.f32 %v1295, %v1308
    %v1310 = vpop.f32.mrf.mxu0
    %v1311 = vadd.f32 %v1297, %v1310
    %1312 = vdwg.mxu0
    %1313 = vmatpush.bf16.msra.mxu0 %v901
    %1314 = vmatpush.bf16.msra.mxu0 %v898
    %1315 = vmatpush.bf16.msra.mxu0 %v895
    %1316 = vmatpush.bf16.msra.mxu0 %v892
    %1317 = vmatpush.bf16.msra.mxu0 %v889
    %1318 = vmatpush.bf16.msra.mxu0 %v886
    %1319 = vmatpush.bf16.msra.mxu0 %v883
    %1320 = vmatpush.bf16.msra.mxu0 %v880
    %1321 = vmatmul.bf16.gmra.mxu0 %v305
    %v1322 = vpop.f32.mrf.mxu0
    %v1323 = vadd.f32 %v278, %v1322
    %v1324 = vpop.f32.mrf.mxu0
    %v1325 = vadd.f32 %v278, %v1324
    %1326 = vdwg.mxu0
    %1327 = vmatpush.bf16.msra.mxu0 %v925
    %1328 = vmatpush.bf16.msra.mxu0 %v922
    %1329 = vmatpush.bf16.msra.mxu0 %v919
    %1330 = vmatpush.bf16.msra.mxu0 %v916
    %1331 = vmatpush.bf16.msra.mxu0 %v913
    %1332 = vmatpush.bf16.msra.mxu0 %v910
    %1333 = vmatpush.bf16.msra.mxu0 %v907
    %1334 = vmatpush.bf16.msra.mxu0 %v904
    %1335 = vmatmul.bf16.gmra.mxu0 %v306
    %v1336 = vpop.f32.mrf.mxu0
    %v1337 = vadd.f32 %v1323, %v1336
    %v1338 = vpop.f32.mrf.mxu0
    %v1339 = vadd.f32 %v1325, %v1338
    %1340 = vdwg.mxu0
    %1341 = vmatpush.bf16.msra.mxu0 %v949
    %1342 = vmatpush.bf16.msra.mxu0 %v946
    %1343 = vmatpush.bf16.msra.mxu0 %v943
    %1344 = vmatpush.bf16.msra.mxu0 %v940
    %1345 = vmatpush.bf16.msra.mxu0 %v937
    %1346 = vmatpush.bf16.msra.mxu0 %v934
    %1347 = vmatpush.bf16.msra.mxu0 %v931
    %1348 = vmatpush.bf16.msra.mxu0 %v928
    %1349 = vmatmul.bf16.gmra.mxu0 %v307
    %v1350 = vpop.f32.mrf.mxu0
    %v1351 = vadd.f32 %v1337, %v1350
    %v1352 = vpop.f32.mrf.mxu0
    %v1353 = vadd.f32 %v1339, %v1352
    %1354 = vdwg.mxu0
    %1355 = vmatpush.bf16.msra.mxu0 %v973
    %1356 = vmatpush.bf16.msra.mxu0 %v970
    %1357 = vmatpush.bf16.msra.mxu0 %v967
    %1358 = vmatpush.bf16.msra.mxu0 %v964
    %1359 = vmatpush.bf16.msra.mxu0 %v961
    %1360 = vmatpush.bf16.msra.mxu0 %v958
    %1361 = vmatpush.bf16.msra.mxu0 %v955
    %1362 = vmatpush.bf16.msra.mxu0 %v952
    %1363 = vmatmul.bf16.gmra.mxu0 %v308
    %v1364 = vpop.f32.mrf.mxu0
    %v1365 = vadd.f32 %v1351, %v1364
    %v1366 = vpop.f32.mrf.mxu0
    %v1367 = vadd.f32 %v1353, %v1366
    %1368 = vdwg.mxu0
    %1369 = vmatpush.bf16.msra.mxu0 %v997
    %1370 = vmatpush.bf16.msra.mxu0 %v994
    %1371 = vmatpush.bf16.msra.mxu0 %v991
    %1372 = vmatpush.bf16.msra.mxu0 %v988
    %1373 = vmatpush.bf16.msra.mxu0 %v985
    %1374 = vmatpush.bf16.msra.mxu0 %v982
    %1375 = vmatpush.bf16.msra.mxu0 %v979
    %1376 = vmatpush.bf16.msra.mxu0 %v976
    %1377 = vmatmul.bf16.gmra.mxu0 %v309
    %v1378 = vpop.f32.mrf.mxu0
    %v1379 = vadd.f32 %v1365, %v1378
    %v1380 = vpop.f32.mrf.mxu0
    %v1381 = vadd.f32 %v1367, %v1380
    %1382 = vdwg.mxu0
    %1383 = vmatpush.bf16.msra.mxu0 %v1021
    %1384 = vmatpush.bf16.msra.mxu0 %v1018
    %1385 = vmatpush.bf16.msra.mxu0 %v1015
    %1386 = vmatpush.bf16.msra.mxu0 %v1012
    %1387 = vmatpush.bf16.msra.mxu0 %v1009
    %1388 = vmatpush.bf16.msra.mxu0 %v1006
    %1389 = vmatpush.bf16.msra.mxu0 %v1003
    %1390 = vmatpush.bf16.msra.mxu0 %v1000
    %1391 = vmatmul.bf16.gmra.mxu0 %v310
    %v1392 = vpop.f32.mrf.mxu0
    %v1393 = vadd.f32 %v1379, %v1392
    %v1394 = vpop.f32.mrf.mxu0
    %v1395 = vadd.f32 %v1381, %v1394
    %1396 = vdwg.mxu0
    %1397 = vmatpush.bf16.msra.mxu0 %v1045
    %1398 = vmatpush.bf16.msra.mxu0 %v1042
    %1399 = vmatpush.bf16.msra.mxu0 %v1039
    %1400 = vmatpush.bf16.msra.mxu0 %v1036
    %1401 = vmatpush.bf16.msra.mxu0 %v1033
    %1402 = vmatpush.bf16.msra.mxu0 %v1030
    %1403 = vmatpush.bf16.msra.mxu0 %v1027
    %1404 = vmatpush.bf16.msra.mxu0 %v1024
    %1405 = vmatmul.bf16.gmra.mxu0 %v311
    %v1406 = vpop.f32.mrf.mxu0
    %v1407 = vadd.f32 %v1393, %v1406
    %v1408 = vpop.f32.mrf.mxu0
    %v1409 = vadd.f32 %v1395, %v1408
    %1410 = vdwg.mxu0
    %1411 = vmatpush.bf16.msra.mxu0 %v902
    %1412 = vmatpush.bf16.msra.mxu0 %v899
    %1413 = vmatpush.bf16.msra.mxu0 %v896
    %1414 = vmatpush.bf16.msra.mxu0 %v893
    %1415 = vmatpush.bf16.msra.mxu0 %v890
    %1416 = vmatpush.bf16.msra.mxu0 %v887
    %1417 = vmatpush.bf16.msra.mxu0 %v884
    %1418 = vmatpush.bf16.msra.mxu0 %v881
    %1419 = vmatmul.bf16.gmra.mxu0 %v305
    %v1420 = vpop.f32.mrf.mxu0
    %v1421 = vadd.f32 %v279, %v1420
    %v1422 = vpop.f32.mrf.mxu0
    %v1423 = vadd.f32 %v279, %v1422
    %1424 = vdwg.mxu0
    %1425 = vmatpush.bf16.msra.mxu0 %v926
    %1426 = vmatpush.bf16.msra.mxu0 %v923
    %1427 = vmatpush.bf16.msra.mxu0 %v920
    %1428 = vmatpush.bf16.msra.mxu0 %v917
    %1429 = vmatpush.bf16.msra.mxu0 %v914
    %1430 = vmatpush.bf16.msra.mxu0 %v911
    %1431 = vmatpush.bf16.msra.mxu0 %v908
    %1432 = vmatpush.bf16.msra.mxu0 %v905
    %1433 = vmatmul.bf16.gmra.mxu0 %v306
    %v1434 = vpop.f32.mrf.mxu0
    %v1435 = vadd.f32 %v1421, %v1434
    %v1436 = vpop.f32.mrf.mxu0
    %v1437 = vadd.f32 %v1423, %v1436
    %1438 = vdwg.mxu0
    %1439 = vmatpush.bf16.msra.mxu0 %v950
    %1440 = vmatpush.bf16.msra.mxu0 %v947
    %1441 = vmatpush.bf16.msra.mxu0 %v944
    %1442 = vmatpush.bf16.msra.mxu0 %v941
    %1443 = vmatpush.bf16.msra.mxu0 %v938
    %1444 = vmatpush.bf16.msra.mxu0 %v935
    %1445 = vmatpush.bf16.msra.mxu0 %v932
    %1446 = vmatpush.bf16.msra.mxu0 %v929
    %1447 = vmatmul.bf16.gmra.mxu0 %v307
    %v1448 = vpop.f32.mrf.mxu0
    %v1449 = vadd.f32 %v1435, %v1448
    %v1450 = vpop.f32.mrf.mxu0
    %v1451 = vadd.f32 %v1437, %v1450
    %1452 = vdwg.mxu0
    %1453 = vmatpush.bf16.msra.mxu0 %v974
    %1454 = vmatpush.bf16.msra.mxu0 %v971
    %1455 = vmatpush.bf16.msra.mxu0 %v968
    %1456 = vmatpush.bf16.msra.mxu0 %v965
    %1457 = vmatpush.bf16.msra.mxu0 %v962
    %1458 = vmatpush.bf16.msra.mxu0 %v959
    %1459 = vmatpush.bf16.msra.mxu0 %v956
    %1460 = vmatpush.bf16.msra.mxu0 %v953
    %1461 = vmatmul.bf16.gmra.mxu0 %v308
    %v1462 = vpop.f32.mrf.mxu0
    %v1463 = vadd.f32 %v1449, %v1462
    %v1464 = vpop.f32.mrf.mxu0
    %v1465 = vadd.f32 %v1451, %v1464
    %1466 = vdwg.mxu0
    %1467 = vmatpush.bf16.msra.mxu0 %v998
    %1468 = vmatpush.bf16.msra.mxu0 %v995
    %1469 = vmatpush.bf16.msra.mxu0 %v992
    %1470 = vmatpush.bf16.msra.mxu0 %v989
    %1471 = vmatpush.bf16.msra.mxu0 %v986
    %1472 = vmatpush.bf16.msra.mxu0 %v983
    %1473 = vmatpush.bf16.msra.mxu0 %v980
    %1474 = vmatpush.bf16.msra.mxu0 %v977
    %1475 = vmatmul.bf16.gmra.mxu0 %v309
    %v1476 = vpop.f32.mrf.mxu0
    %v1477 = vadd.f32 %v1463, %v1476
    %v1478 = vpop.f32.mrf.mxu0
    %v1479 = vadd.f32 %v1465, %v1478
    %1480 = vdwg.mxu0
    %1481 = vmatpush.bf16.msra.mxu0 %v1022
    %1482 = vmatpush.bf16.msra.mxu0 %v1019
    %1483 = vmatpush.bf16.msra.mxu0 %v1016
    %1484 = vmatpush.bf16.msra.mxu0 %v1013
    %1485 = vmatpush.bf16.msra.mxu0 %v1010
    %1486 = vmatpush.bf16.msra.mxu0 %v1007
    %1487 = vmatpush.bf16.msra.mxu0 %v1004
    %1488 = vmatpush.bf16.msra.mxu0 %v1001
    %1489 = vmatmul.bf16.gmra.mxu0 %v310
    %v1490 = vpop.f32.mrf.mxu0
    %v1491 = vadd.f32 %v1477, %v1490
    %v1492 = vpop.f32.mrf.mxu0
    %v1493 = vadd.f32 %v1479, %v1492
    %1494 = vdwg.mxu0
    %1495 = vmatpush.bf16.msra.mxu0 %v1046
    %1496 = vmatpush.bf16.msra.mxu0 %v1043
    %1497 = vmatpush.bf16.msra.mxu0 %v1040
    %1498 = vmatpush.bf16.msra.mxu0 %v1037
    %1499 = vmatpush.bf16.msra.mxu0 %v1034
    %1500 = vmatpush.bf16.msra.mxu0 %v1031
    %1501 = vmatpush.bf16.msra.mxu0 %v1028
    %1502 = vmatpush.bf16.msra.mxu0 %v1025
    %1503 = vmatmul.bf16.gmra.mxu0 %v311
    %v1504 = vpop.f32.mrf.mxu0
    %v1505 = vadd.f32 %v1491, %v1504
    %v1506 = vpop.f32.mrf.mxu0
    %v1507 = vadd.f32 %v1493, %v1506
    %1508 = vdwg.mxu0
    %v1509 = vmax.f32 %v1309, 0.0
    %v1510 = vmax.f32 %v1407, 0.0
    %v1511 = vmax.f32 %v1505, 0.0
    %v1512 = vmax.f32 %v1311, 0.0
    %v1513 = vmax.f32 %v1409, 0.0
    %v1514 = vmax.f32 %v1507, 0.0
    %v1515 = vpack.c.bf16 %v1512, %v1509
    %v1516 = vpack.c.bf16 %v1513, %v1510
    %v1517 = vpack.c.bf16 %v1514, %v1511
    %v1518 = vld [vmem:[%s3] sm:$0xf]
    %v1519 = vld [vmem:[%s3 + $0x4] sm:$0xf]
    %v1520 = vld [vmem:[%s3 + $0x8] sm:$0xf]
    %v1521 = vld [vmem:[%s3 + $0xc] sm:$0xf]
    %v1522 = vld [vmem:[%s3 + $0x10] sm:$0xf]
    %v1523 = vld [vmem:[%s3 + $0x14] sm:$0xf]
    %v1524 = vld [vmem:[%s3 + $0x18] sm:$0xf]
    %v1525 = vld [vmem:[%s3 + $0x1c] sm:$0xf]
    %v1526 = vld [vmem:[%s3 + $0x20] sm:$0xf]
    %v1527 = vld [vmem:[%s3 + $0x24] sm:$0xf]
    %v1528 = vld [vmem:[%s3 + $0x28] sm:$0xf]
    %v1529 = vld [vmem:[%s3 + $0x2c] sm:$0xf]
    %v1530 = vld [vmem:[%s3 + $0x30] sm:$0xf]
    %v1531 = vld [vmem:[%s3 + $0x34] sm:$0xf]
    %v1532 = vld [vmem:[%s3 + $0x38] sm:$0xf]
    %v1533 = vld [vmem:[%s3 + $0x3c] sm:$0xf]
    %v1534 = vld [vmem:[%s3 + $0x40] sm:$0xf]
    %v1535 = vld [vmem:[%s3 + $0x44] sm:$0xf]
    %v1536 = vld [vmem:[%s3 + $0x48] sm:$0xf]
    %v1537 = vld [vmem:[%s3 + $0x4c] sm:$0xf]
    %v1538 = vld [vmem:[%s3 + $0x50] sm:$0xf]
    %v1539 = vld [vmem:[%s3 + $0x54] sm:$0xf]
    %v1540 = vld [vmem:[%s3 + $0x58] sm:$0xf]
    %v1541 = vld [vmem:[%s3 + $0x5c] sm:$0xf]
    %v1542 = vld [vmem:[%s3 + $0x60] sm:$0xf]
    %v1543 = vld [vmem:[%s3 + $0x64] sm:$0xf]
    %v1544 = vld [vmem:[%s3 + $0x68] sm:$0xf]
    %v1545 = vld [vmem:[%s3 + $0x6c] sm:$0xf]
    %v1546 = vld [vmem:[%s3 + $0x70] sm:$0xf]
    %v1547 = vld [vmem:[%s3 + $0x74] sm:$0xf]
    %v1548 = vld [vmem:[%s3 + $0x78] sm:$0xf]
    %v1549 = vld [vmem:[%s3 + $0x7c] sm:$0xf]
    %v1550 = vld [vmem:[%s3 + $0x80] sm:$0xf]
    %v1551 = vld [vmem:[%s3 + $0x84] sm:$0xf]
    %v1552 = vld [vmem:[%s3 + $0x88] sm:$0xf]
    %v1553 = vld [vmem:[%s3 + $0x8c] sm:$0xf]
    %v1554 = vld [vmem:[%s3 + $0x90] sm:$0xf]
    %v1555 = vld [vmem:[%s3 + $0x94] sm:$0xf]
    %v1556 = vld [vmem:[%s3 + $0x98] sm:$0xf]
    %v1557 = vld [vmem:[%s3 + $0x9c] sm:$0xf]
    %v1558 = vld [vmem:[%s3 + $0xa0] sm:$0xf]
    %v1559 = vld [vmem:[%s3 + $0xa4] sm:$0xf]
    %v1560 = vld [vmem:[%s3 + $0xa8] sm:$0xf]
    %v1561 = vld [vmem:[%s3 + $0xac] sm:$0xf]
    %v1562 = vld [vmem:[%s3 + $0xb0] sm:$0xf]
    %v1563 = vld [vmem:[%s3 + $0xb4] sm:$0xf]
    %v1564 = vld [vmem:[%s3 + $0xb8] sm:$0xf]
    %v1565 = vld [vmem:[%s3 + $0xbc] sm:$0xf]
    %v1566 = vld [vmem:[%s4] sm:$0x1]
    %v1568 = vperm.slane %v1566, 0
    %v1618 = vunpack.c.l.b16 %v1518
    %v1619 = vunpack.c.l.b16 %v1519
    %v1620 = vunpack.c.l.b16 %v1520
    %v1621 = vunpack.c.l.b16 %v1521
    %v1622 = vunpack.c.l.b16 %v1522
    %v1623 = vunpack.c.l.b16 %v1523
    %v1624 = vunpack.c.l.b16 %v1524
    %v1625 = vunpack.c.l.b16 %v1525
    %v1626 = vunpack.c.l.b16 %v1526
    %v1627 = vunpack.c.l.b16 %v1527
    %v1628 = vunpack.c.l.b16 %v1528
    %v1629 = vunpack.c.l.b16 %v1529
    %v1630 = vunpack.c.l.b16 %v1530
    %v1631 = vunpack.c.l.b16 %v1531
    %v1632 = vunpack.c.l.b16 %v1532
    %v1633 = vunpack.c.l.b16 %v1533
    %v1634 = vunpack.c.l.b16 %v1534
    %v1635 = vunpack.c.l.b16 %v1535
    %v1636 = vunpack.c.l.b16 %v1536
    %v1637 = vunpack.c.l.b16 %v1537
    %v1638 = vunpack.c.l.b16 %v1538
    %v1639 = vunpack.c.l.b16 %v1539
    %v1640 = vunpack.c.l.b16 %v1540
    %v1641 = vunpack.c.l.b16 %v1541
    %v1642 = vunpack.c.l.b16 %v1542
    %v1643 = vunpack.c.l.b16 %v1543
    %v1644 = vunpack.c.l.b16 %v1544
    %v1645 = vunpack.c.l.b16 %v1545
    %v1646 = vunpack.c.l.b16 %v1546
    %v1647 = vunpack.c.l.b16 %v1547
    %v1648 = vunpack.c.l.b16 %v1548
    %v1649 = vunpack.c.l.b16 %v1549
    %v1650 = vunpack.c.l.b16 %v1550
    %v1651 = vunpack.c.l.b16 %v1551
    %v1652 = vunpack.c.l.b16 %v1552
    %v1653 = vunpack.c.l.b16 %v1553
    %v1654 = vunpack.c.l.b16 %v1554
    %v1655 = vunpack.c.l.b16 %v1555
    %v1656 = vunpack.c.l.b16 %v1556
    %v1657 = vunpack.c.l.b16 %v1557
    %v1658 = vunpack.c.l.b16 %v1558
    %v1659 = vunpack.c.l.b16 %v1559
    %v1660 = vunpack.c.l.b16 %v1560
    %v1661 = vunpack.c.l.b16 %v1561
    %v1662 = vunpack.c.l.b16 %v1562
    %v1663 = vunpack.c.l.b16 %v1563
    %v1664 = vunpack.c.l.b16 %v1564
    %v1665 = vunpack.c.l.b16 %v1565
    %v1666 = vpack.c.b16 %v1619, %v1618
    %v1667 = vpack.c.b16 %v1621, %v1620
    %v1668 = vpack.c.b16 %v1623, %v1622
    %v1669 = vpack.c.b16 %v1625, %v1624
    %v1670 = vpack.c.b16 %v1627, %v1626
    %v1671 = vpack.c.b16 %v1629, %v1628
    %v1672 = vpack.c.b16 %v1631, %v1630
    %v1673 = vpack.c.b16 %v1633, %v1632
    %v1674 = vpack.c.b16 %v1635, %v1634
    %v1675 = vpack.c.b16 %v1637, %v1636
    %v1676 = vpack.c.b16 %v1639, %v1638
    %v1677 = vpack.c.b16 %v1641, %v1640
    %v1678 = vpack.c.b16 %v1643, %v1642
    %v1679 = vpack.c.b16 %v1645, %v1644
    %v1680 = vpack.c.b16 %v1647, %v1646
    %v1681 = vpack.c.b16 %v1649, %v1648
    %v1682 = vpack.c.b16 %v1651, %v1650
    %v1683 = vpack.c.b16 %v1653, %v1652
    %v1684 = vpack.c.b16 %v1655, %v1654
    %v1685 = vpack.c.b16 %v1657, %v1656
    %v1686 = vpack.c.b16 %v1659, %v1658
    %v1687 = vpack.c.b16 %v1661, %v1660
    %v1688 = vpack.c.b16 %v1663, %v1662
    %v1689 = vpack.c.b16 %v1665, %v1664
    %1714 = vmatpush.bf16.msra.mxu0 %v1673
    %1715 = vmatpush.bf16.msra.mxu0 %v1672
    %1716 = vmatpush.bf16.msra.mxu0 %v1671
    %1717 = vmatpush.bf16.msra.mxu0 %v1670
    %1718 = vmatpush.bf16.msra.mxu0 %v1669
    %1719 = vmatpush.bf16.msra.mxu0 %v1668
    %1720 = vmatpush.bf16.msra.mxu0 %v1667
    %1721 = vmatpush.bf16.msra.mxu0 %v1666
    %1722 = vmatmul.bf16.gmra.mxu0 %v1515
    %v1723 = vpop.f32.mrf.mxu0
    %v1724 = vadd.f32 %v1568, %v1723
    %v1725 = vpop.f32.mrf.mxu0
    %v1726 = vadd.f32 %v1568, %v1725
    %1727 = vdwg.mxu0
    %1728 = vmatpush.bf16.msra.mxu0 %v1681
    %1729 = vmatpush.bf16.msra.mxu0 %v1680
    %1730 = vmatpush.bf16.msra.mxu0 %v1679
    %1731 = vmatpush.bf16.msra.mxu0 %v1678
    %1732 = vmatpush.bf16.msra.mxu0 %v1677
    %1733 = vmatpush.bf16.msra.mxu0 %v1676
    %1734 = vmatpush.bf16.msra.mxu0 %v1675
    %1735 = vmatpush.bf16.msra.mxu0 %v1674
    %1736 = vmatmul.bf16.gmra.mxu0 %v1516
    %v1737 = vpop.f32.mrf.mxu0
    %v1738 = vadd.f32 %v1724, %v1737
    %v1739 = vpop.f32.mrf.mxu0
    %v1740 = vadd.f32 %v1726, %v1739
    %1741 = vdwg.mxu0
    %1742 = vmatpush.bf16.msra.mxu0 %v1689
    %1743 = vmatpush.bf16.msra.mxu0 %v1688
    %1744 = vmatpush.bf16.msra.mxu0 %v1687
    %1745 = vmatpush.bf16.msra.mxu0 %v1686
    %1746 = vmatpush.bf16.msra.mxu0 %v1685
    %1747 = vmatpush.bf16.msra.mxu0 %v1684
    %1748 = vmatpush.bf16.msra.mxu0 %v1683
    %1749 = vmatpush.bf16.msra.mxu0 %v1682
    %1750 = vmatmul.bf16.gmra.mxu0 %v1517
    %v1751 = vpop.f32.mrf.mxu0
    %v1752 = vadd.f32 %v1738, %v1751
    %v1753 = vpop.f32.mrf.mxu0
    %v1754 = vadd.f32 %v1740, %v1753
    %1755 = vdwg.mxu0
    %v1756 = vmax.f32 %v1752, 0.0
    %v1757 = vmax.f32 %v1754, 0.0
    %v1758 = vpack.c.bf16 %v1757, %v1756
    %v1759 = vld [vmem:[%s5] sm:$0xf]
    %v1760 = vld [vmem:[%s5 + $0x4] sm:$0xf]
    %v1761 = vld [vmem:[%s5 + $0x8] sm:$0xf]
    %v1762 = vld [vmem:[%s5 + $0xc] sm:$0xf]
    %v1763 = vld [vmem:[%s5 + $0x10] sm:$0xf]
    %v1764 = vld [vmem:[%s5 + $0x14] sm:$0xf]
    %v1765 = vld [vmem:[%s5 + $0x18] sm:$0xf]
    %v1766 = vld [vmem:[%s5 + $0x1c] sm:$0xf]
    %v1767 = vld [vmem:[%s5 + $0x20] sm:$0xf]
    %v1768 = vld [vmem:[%s5 + $0x24] sm:$0xf]
    %v1769 = vld [vmem:[%s5 + $0x28] sm:$0xf]
    %v1770 = vld [vmem:[%s5 + $0x2c] sm:$0xf]
    %v1771 = vld [vmem:[%s5 + $0x30] sm:$0xf]
    %v1772 = vld [vmem:[%s5 + $0x34] sm:$0xf]
    %v1773 = vld [vmem:[%s5 + $0x38] sm:$0xf]
    %v1774 = vld [vmem:[%s5 + $0x3c] sm:$0xf]
    %v1775 = vld [vmem:[%s6] sm:$0x1]
    %v1777 = vperm.slane %v1775, 0
    %v1795 = vunpack.c.l.b16 %v1759
    %v1796 = vunpack.c.l.b16 %v1760
    %v1797 = vunpack.c.l.b16 %v1761
    %v1798 = vunpack.c.l.b16 %v1762
    %v1799 = vunpack.c.l.b16 %v1763
    %v1800 = vunpack.c.l.b16 %v1764
    %v1801 = vunpack.c.l.b16 %v1765
    %v1802 = vunpack.c.l.b16 %v1766
    %v1803 = vunpack.c.l.b16 %v1767
    %v1804 = vunpack.c.l.b16 %v1768
    %v1805 = vunpack.c.l.b16 %v1769
    %v1806 = vunpack.c.l.b16 %v1770
    %v1807 = vunpack.c.l.b16 %v1771
    %v1808 = vunpack.c.l.b16 %v1772
    %v1809 = vunpack.c.l.b16 %v1773
    %v1810 = vunpack.c.l.b16 %v1774
    %v1811 = vpack.c.b16 %v1796, %v1795
    %v1812 = vpack.c.b16 %v1798, %v1797
    %v1813 = vpack.c.b16 %v1800, %v1799
    %v1814 = vpack.c.b16 %v1802, %v1801
    %v1815 = vpack.c.b16 %v1804, %v1803
    %v1816 = vpack.c.b16 %v1806, %v1805
    %v1817 = vpack.c.b16 %v1808, %v1807
    %v1818 = vpack.c.b16 %v1810, %v1809
    %1827 = vmatpush.bf16.msra.mxu0 %v1818
    %1828 = vmatpush.bf16.msra.mxu0 %v1817
    %1829 = vmatpush.bf16.msra.mxu0 %v1816
    %1830 = vmatpush.bf16.msra.mxu0 %v1815
    %1831 = vmatpush.bf16.msra.mxu0 %v1814
    %1832 = vmatpush.bf16.msra.mxu0 %v1813
    %1833 = vmatpush.bf16.msra.mxu0 %v1812
    %1834 = vmatpush.bf16.msra.mxu0 %v1811
    %1835 = vmatmul.bf16.gmra.mxu0 %v1758
    %v1836 = vpop.f32.mrf.mxu0
    %v1837 = vadd.f32 %v1777, %v1836
    %v1838 = vpop.f32.mrf.mxu0
    %v1839 = vadd.f32 %v1777, %v1838
    %1840 = vdwg.mxu0
    %1841 = vst [vmem:[#allocation5] sm:$0xff] %v1837
    %1842 = vst [vmem:[#allocation5 + $0x8] sm:$0xff] %v1839
    // Predicated region
    $region34: #{_fc1_padded_forward.1} parent=1 // pred_check
      _
    $region35: #{_fc1_padded_forward.1} parent=1 // pred_check_branch
      %1844 = sbr.rel (0) target = $region37
    $region36: #{_fc1_padded_forward.1} parent=1 // pred_region
      %1846 = vsyncadd [#allocation4], 0
      %s1847 = sshll.u32 [#allocation5], 4
      %s1848 = int_to_ptr.vmem [resolvable:$true] %s1847
      %s1849 = sshll.u32 %s7, 4
      %s1850 = int_to_ptr.hbm [resolvable:$true] %s1849
      %1855 = dma.vmem_to_hbm [thread:$0]  %s1848, 256, %s1850, [#allocation4], 128, 128, 8
    $region37: #{_fc1_padded_forward.1} parent=1 // pred_fallthru
      _
    // Predicated region
    $region38: #{_fc1_padded_forward.1} parent=1 // pred_check
      _
    $region39: #{_fc1_padded_forward.1} parent=1 // pred_check_branch
      %1857 = sbr.rel (0) target = $region41
    $region40: #{_fc1_padded_forward.1} parent=1 // pred_region
      %1859 = dma.done [#allocation4], 256
    $region41: #{_fc1_padded_forward.1} parent=1 // pred_fallthru
      _
    %1860 = vsyncpa [#allocation3], 1
    %1861 = vsyncpa [#allocation4], 1

</llo_original>
